<compile_context>
chip_gen: v7x
topology: tpu7x:2x2x1
jax: 0.10.0
libtpu: 0.0.40
codegen_flags: <defaults>
</compile_context>

<pallas_src>
import jax
import jax.numpy as jnp
from jax import lax
from jax.experimental import pallas as pl
from jax.experimental.pallas import tpu as pltpu

INPUT_SIZE = 4
HIDDEN_SIZE = 128
NUM_CLASSES = 3
OUT_PAD = 128       # lane-dense padded width for the FC output
B_TILE = 8          # f32 sublane tile: batch is padded to a multiple of this
DROPOUT = 0.4       # eval-mode dropout == identity (matches nn.Dropout in .eval())
# TODO(synk): training-mode dropout (Bernoulli mask via pltpu.prng_*) not implemented;
#             forward here matches PyTorch inference semantics.


def lstm_fc_kernel(x_ref, wih_ref, whh_ref, b_ref, wfc_ref, bfc_ref, out_ref, xw_ref):
    """Single invocation: full LSTM recurrence + FC, everything resident in VMEM.

    x_ref:   (T*Bp, I)   bf16, time-major flattened, batch padded to Bp=8
    wih_ref: (I, 4H)     bf16, gate columns permuted to (i, f, o, g)
    whh_ref: (H, 4H)     bf16, gate columns permuted to (i, f, o, g)
    b_ref:   (1, 4H)     f32  (bias_ih + bias_hh, same permutation)
    wfc_ref: (H, 128)    bf16 (padded W_fc^T)
    bfc_ref: (1, 128)    f32  (padded b_fc)
    out_ref: (Bp, 128)   f32  (lane-dense padded FC output)
    xw_ref:  (T*Bp, 4H)  f32 VMEM scratch for the precomputed input projection
    """
    Bp = out_ref.shape[0]
    H = whh_ref.shape[0]
    T = xw_ref.shape[0] // Bp

    # One batched MXU call for the input projection of ALL timesteps (bias folded in),
    # written to VMEM scratch so it is not register-resident across the unrolled loop.
    xw_ref[...] = jnp.dot(x_ref[...], wih_ref[...],
                          preferred_element_type=jnp.float32) + b_ref[...]

    h = jnp.zeros((Bp, H), jnp.float32)
    c = jnp.zeros((Bp, H), jnp.float32)

    # T is small and static -> fully unrolled recurrence (full LLO scheduling visibility).
    # Only h @ W_hh (one (8,128)@(128,512) bf16 MXU call) sits on the serial path;
    # W_hh is read from its Ref at the dot site to avoid a long-lived ~32-vreg value.
    for t in range(T):
        gates = xw_ref[t * Bp:(t + 1) * Bp, :] + jnp.dot(
            h.astype(jnp.bfloat16), whh_ref[...],
            preferred_element_type=jnp.float32)                       # (Bp, 4H) f32
        # Gate order (after wrapper permutation): i, f, o, g.
        # One wide sigmoid over the first 3H lanes, one tanh over the last H.
        # sigmoid(x) = 0.5*tanh(0.5*x) + 0.5 -> single native EUP op per region.
        sig = 0.5 * jnp.tanh(0.5 * gates[:, 0:3 * H]) + 0.5
        i_g = sig[:, 0:H]
        f_g = sig[:, H:2 * H]
        o_g = sig[:, 2 * H:3 * H]
        g_g = jnp.tanh(gates[:, 3 * H:4 * H])
        c = f_g * c + i_g * g_g
        h = o_g * jnp.tanh(c)

    # dropout is identity in eval mode; final FC into a lane-dense (Bp, 128) slab.
    out_ref[...] = (jnp.dot(h.astype(jnp.bfloat16), wfc_ref[...],
                            preferred_element_type=jnp.float32)
                    + bfc_ref[...]).astype(out_ref.dtype)


def forex_model_forward(x_btI, params):
    """x_btI: (B, T, I) float32, batch_first like the PyTorch module. Returns (B, C)."""
    B, T, I = x_btI.shape
    H = HIDDEN_SIZE
    C = NUM_CLASSES
    Bp = ((B + B_TILE - 1) // B_TILE) * B_TILE   # pad batch to the 8-row sublane tile

    # Zero-pad batch, go time-major and flatten so each timestep's rows of the
    # precomputed projection start at an (8,128)-tile-aligned sublane offset.
    x_pad = jnp.pad(x_btI, ((0, Bp - B), (0, 0), (0, 0)))
    x_tb = jnp.transpose(x_pad, (1, 0, 2)).reshape(T * Bp, I).astype(jnp.bfloat16)

    # Permute gate columns from PyTorch (i, f, g, o) to (i, f, o, g) so the kernel
    # applies one sigmoid to the first 3H columns and one tanh to the last H.
    perm = jnp.concatenate([jnp.arange(0, 2 * H),
                            jnp.arange(3 * H, 4 * H),
                            jnp.arange(2 * H, 3 * H)])
    wih_t = params["weight_ih"].T[:, perm].astype(jnp.bfloat16)             # (I, 4H)
    whh_t = params["weight_hh"].T[:, perm].astype(jnp.bfloat16)             # (H, 4H)
    bias = (params["bias_ih"] + params["bias_hh"])[perm].reshape(1, 4 * H)  # f32
    wfc_t = jnp.pad(params["fc_weight"].T,
                    ((0, 0), (0, OUT_PAD - C))).astype(jnp.bfloat16)        # (H, 128)
    bfc = jnp.pad(params["fc_bias"].reshape(1, C),
                  ((0, 0), (0, OUT_PAD - C))).astype(jnp.float32)           # (1, 128)

    vmem = pl.BlockSpec(memory_space=pltpu.MemorySpace.VMEM)
    out_padded = pl.pallas_call(
        lstm_fc_kernel,
        out_shape=jax.ShapeDtypeStruct((Bp, OUT_PAD), jnp.float32),
        in_specs=[vmem] * 6,
        out_specs=vmem,
        scratch_shapes=[pltpu.VMEM((T * Bp, 4 * H), jnp.float32)],
    )(x_tb, wih_t, whh_t, bias, wfc_t, bfc)

    # TODO(synk): for large batches on v7x, shard the (padded) batch across the two
    #             TensorCores via a leading "parallel" grid axis; moot at B=2.
    return out_padded[:B, :C]


def forex_model_reference(x_btI, params):
    """Pure-JAX f32 reference reproducing nn.LSTM(batch_first) + fc (eval mode)."""
    H = HIDDEN_SIZE
    wih, whh = params["weight_ih"], params["weight_hh"]
    b = params["bias_ih"] + params["bias_hh"]
    B = x_btI.shape[0]

    def step(carry, x_t):
        h, c = carry
        gates = x_t @ wih.T + h @ whh.T + b
        i = jax.nn.sigmoid(gates[:, 0:H])
        f = jax.nn.sigmoid(gates[:, H:2 * H])
        g = jnp.tanh(gates[:, 2 * H:3 * H])
        o = jax.nn.sigmoid(gates[:, 3 * H:4 * H])
        c = f * c + i * g
        h = o * jnp.tanh(c)
        return (h, c), None

    h0 = jnp.zeros((B, H), jnp.float32)
    c0 = jnp.zeros((B, H), jnp.float32)
    (hT, _), _ = lax.scan(step, (h0, c0), jnp.transpose(x_btI, (1, 0, 2)))
    return hT @ params["fc_weight"].T + params["fc_bias"]


def init_params(key):
    """Deterministic synthetic init matching PyTorch LSTM/Linear parameter shapes."""
    H, I, C = HIDDEN_SIZE, INPUT_SIZE, NUM_CLASSES
    ks = jax.random.split(key, 6)
    s = 1.0 / jnp.sqrt(H)
    return {
        "weight_ih": jax.random.uniform(ks[0], (4 * H, I), jnp.float32, -s, s),
        "weight_hh": jax.random.uniform(ks[1], (4 * H, H), jnp.float32, -s, s),
        "bias_ih": jax.random.uniform(ks[2], (4 * H,), jnp.float32, -s, s),
        "bias_hh": jax.random.uniform(ks[3], (4 * H,), jnp.float32, -s, s),
        "fc_weight": jax.random.uniform(ks[4], (C, H), jnp.float32, -s, s),
        "fc_bias": jax.random.uniform(ks[5], (C,), jnp.float32, -s, s),
    }


if __name__ == "__main__":
    key = jax.random.PRNGKey(0)
    k_p, k_x = jax.random.split(key)
    params = init_params(k_p)

    B, T = 2, 8  # small batch / sequence length
    x = jax.random.normal(k_x, (B, T, INPUT_SIZE), jnp.float32)

    out = forex_model_forward(x, params)
    out = jax.block_until_ready(out)

    ref = forex_model_reference(x, params)
    assert out.shape == (B, NUM_CLASSES)
    # bf16 MXU operands with f32 accumulation -> loosened tolerance vs f32 reference.
    assert jnp.allclose(out, ref, atol=3e-2, rtol=3e-2), (out, ref)
    print("KERNEL_OK")
</pallas_src>

<mosaic_0001>
module attributes {stable_mosaic.version = 11 : i64} {
  func.func @lstm_fc_kernel(%arg0: memref<64x4xbf16, #tpu.memory_space<vmem>>, %arg1: memref<4x512xbf16, #tpu.memory_space<vmem>>, %arg2: memref<128x512xbf16, #tpu.memory_space<vmem>>, %arg3: memref<1x512xf32, #tpu.memory_space<vmem>>, %arg4: memref<128x128xbf16, #tpu.memory_space<vmem>>, %arg5: memref<1x128xf32, #tpu.memory_space<vmem>>, %arg6: memref<8x128xf32, #tpu.memory_space<vmem>>, %arg7: memref<64x512xf32, #tpu.memory_space<vmem>>) attributes {dimension_semantics = [], scalar_prefetch = 0 : i64, scratch_operands = 1 : i64, tpu.core_type = #tpu.core_type<tc>} {
    %c0 = arith.constant 0 : index
    %c0_0 = arith.constant 0 : index
    %0 = vector.load %arg0[%c0, %c0_0] : memref<64x4xbf16, #tpu.memory_space<vmem>>, vector<64x4xbf16>
    %c0_1 = arith.constant 0 : index
    %c0_2 = arith.constant 0 : index
    %1 = vector.load %arg1[%c0_1, %c0_2] : memref<4x512xbf16, #tpu.memory_space<vmem>>, vector<4x512xbf16>
    %cst = arith.constant dense<0.000000e+00> : vector<64x512xf32>
    %2 = tpu.matmul %0, %1, %cst {dimension_numbers = #tpu.dot_dimension_numbers<[1], [0], [0], [1], [0, 0, 1, 1], [], []>} : vector<64x4xbf16>, vector<4x512xbf16>, vector<64x512xf32> -> vector<64x512xf32>
    %c0_3 = arith.constant 0 : index
    %c0_4 = arith.constant 0 : index
    %3 = vector.load %arg3[%c0_3, %c0_4] : memref<1x512xf32, #tpu.memory_space<vmem>>, vector<1x512xf32>
    %4 = vector.broadcast %3 : vector<1x512xf32> to vector<64x512xf32>
    %5 = arith.addf %2, %4 : vector<64x512xf32>
    %c0_5 = arith.constant 0 : index
    %c0_6 = arith.constant 0 : index
    %6 = vector.load %arg7[%c0_5, %c0_6] : memref<64x512xf32, #tpu.memory_space<vmem>>, vector<64x512xf32>
    tpu.vector_store %arg7[%c0_5, %c0_6], %5 {strides = array<i32>} : memref<64x512xf32, #tpu.memory_space<vmem>>, vector<64x512xf32>,
    %cst_7 = arith.constant 0.000000e+00 : f32
    %7 = vector.broadcast %cst_7 : f32 to vector<8x128xf32>
    %cst_8 = arith.constant 0.000000e+00 : f32
    %8 = vector.broadcast %cst_8 : f32 to vector<8x128xf32>
    %c0_9 = arith.constant 0 : index
    %c0_10 = arith.constant 0 : index
    %9 = vector.load %arg7[%c0_9, %c0_10] : memref<64x512xf32, #tpu.memory_space<vmem>>, vector<8x512xf32>
    %10 = arith.truncf %7 : vector<8x128xf32> to vector<8x128xbf16>
    %c0_11 = arith.constant 0 : index
    %c0_12 = arith.constant 0 : index
    %11 = vector.load %arg2[%c0_11, %c0_12] : memref<128x512xbf16, #tpu.memory_space<vmem>>, vector<128x512xbf16>
    %cst_13 = arith.constant dense<0.000000e+00> : vector<8x512xf32>
    %12 = tpu.matmul %10, %11, %cst_13 {dimension_numbers = #tpu.dot_dimension_numbers<[1], [0], [0], [1], [0, 0, 1, 1], [], []>} : vector<8x128xbf16>, vector<128x512xbf16>, vector<8x512xf32> -> vector<8x512xf32>
    %13 = arith.addf %9, %12 : vector<8x512xf32>
    %14 = vector.extract_strided_slice %13 {offsets = [0, 0], sizes = [8, 384], strides = [1, 1]} : vector<8x512xf32> to vector<8x384xf32>
    %cst_14 = arith.constant 5.000000e-01 : f32
    %15 = vector.broadcast %cst_14 : f32 to vector<8x384xf32>
    %16 = arith.mulf %15, %14 : vector<8x384xf32>
    %17 = math.tanh %16 : vector<8x384xf32>
    %cst_15 = arith.constant 5.000000e-01 : f32
    %18 = vector.broadcast %cst_15 : f32 to vector<8x384xf32>
    %19 = arith.mulf %18, %17 : vector<8x384xf32>
    %cst_16 = arith.constant 5.000000e-01 : f32
    %20 = vector.broadcast %cst_16 : f32 to vector<8x384xf32>
    %21 = arith.addf %19, %20 : vector<8x384xf32>
    %22 = vector.extract_strided_slice %21 {offsets = [0, 0], sizes = [8, 128], strides = [1, 1]} : vector<8x384xf32> to vector<8x128xf32>
    %23 = vector.extract_strided_slice %21 {offsets = [0, 128], sizes = [8, 128], strides = [1, 1]} : vector<8x384xf32> to vector<8x128xf32>
    %24 = vector.extract_strided_slice %21 {offsets = [0, 256], sizes = [8, 128], strides = [1, 1]} : vector<8x384xf32> to vector<8x128xf32>
    %25 = vector.extract_strided_slice %13 {offsets = [0, 384], sizes = [8, 128], strides = [1, 1]} : vector<8x512xf32> to vector<8x128xf32>
    %26 = math.tanh %25 : vector<8x128xf32>
    %27 = arith.mulf %23, %8 : vector<8x128xf32>
    %28 = arith.mulf %22, %26 : vector<8x128xf32>
    %29 = arith.addf %27, %28 : vector<8x128xf32>
    %30 = math.tanh %29 : vector<8x128xf32>
    %31 = arith.mulf %24, %30 : vector<8x128xf32>
    %c8 = arith.constant 8 : index
    %c0_17 = arith.constant 0 : index
    %32 = vector.load %arg7[%c8, %c0_17] : memref<64x512xf32, #tpu.memory_space<vmem>>, vector<8x512xf32>
    %33 = arith.truncf %31 : vector<8x128xf32> to vector<8x128xbf16>
    %c0_18 = arith.constant 0 : index
    %c0_19 = arith.constant 0 : index
    %34 = vector.load %arg2[%c0_18, %c0_19] : memref<128x512xbf16, #tpu.memory_space<vmem>>, vector<128x512xbf16>
    %cst_20 = arith.constant dense<0.000000e+00> : vector<8x512xf32>
    %35 = tpu.matmul %33, %34, %cst_20 {dimension_numbers = #tpu.dot_dimension_numbers<[1], [0], [0], [1], [0, 0, 1, 1], [], []>} : vector<8x128xbf16>, vector<128x512xbf16>, vector<8x512xf32> -> vector<8x512xf32>
    %36 = arith.addf %32, %35 : vector<8x512xf32>
    %37 = vector.extract_strided_slice %36 {offsets = [0, 0], sizes = [8, 384], strides = [1, 1]} : vector<8x512xf32> to vector<8x384xf32>
    %cst_21 = arith.constant 5.000000e-01 : f32
    %38 = vector.broadcast %cst_21 : f32 to vector<8x384xf32>
    %39 = arith.mulf %38, %37 : vector<8x384xf32>
    %40 = math.tanh %39 : vector<8x384xf32>
    %cst_22 = arith.constant 5.000000e-01 : f32
    %41 = vector.broadcast %cst_22 : f32 to vector<8x384xf32>
    %42 = arith.mulf %41, %40 : vector<8x384xf32>
    %cst_23 = arith.constant 5.000000e-01 : f32
    %43 = vector.broadcast %cst_23 : f32 to vector<8x384xf32>
    %44 = arith.addf %42, %43 : vector<8x384xf32>
    %45 = vector.extract_strided_slice %44 {offsets = [0, 0], sizes = [8, 128], strides = [1, 1]} : vector<8x384xf32> to vector<8x128xf32>
    %46 = vector.extract_strided_slice %44 {offsets = [0, 128], sizes = [8, 128], strides = [1, 1]} : vector<8x384xf32> to vector<8x128xf32>
    %47 = vector.extract_strided_slice %44 {offsets = [0, 256], sizes = [8, 128], strides = [1, 1]} : vector<8x384xf32> to vector<8x128xf32>
    %48 = vector.extract_strided_slice %36 {offsets = [0, 384], sizes = [8, 128], strides = [1, 1]} : vector<8x512xf32> to vector<8x128xf32>
    %49 = math.tanh %48 : vector<8x128xf32>
    %50 = arith.mulf %46, %29 : vector<8x128xf32>
    %51 = arith.mulf %45, %49 : vector<8x128xf32>
    %52 = arith.addf %50, %51 : vector<8x128xf32>
    %53 = math.tanh %52 : vector<8x128xf32>
    %54 = arith.mulf %47, %53 : vector<8x128xf32>
    %c16 = arith.constant 16 : index
    %c0_24 = arith.constant 0 : index
    %55 = vector.load %arg7[%c16, %c0_24] : memref<64x512xf32, #tpu.memory_space<vmem>>, vector<8x512xf32>
    %56 = arith.truncf %54 : vector<8x128xf32> to vector<8x128xbf16>
    %c0_25 = arith.constant 0 : index
    %c0_26 = arith.constant 0 : index
    %57 = vector.load %arg2[%c0_25, %c0_26] : memref<128x512xbf16, #tpu.memory_space<vmem>>, vector<128x512xbf16>
    %cst_27 = arith.constant dense<0.000000e+00> : vector<8x512xf32>
    %58 = tpu.matmul %56, %57, %cst_27 {dimension_numbers = #tpu.dot_dimension_numbers<[1], [0], [0], [1], [0, 0, 1, 1], [], []>} : vector<8x128xbf16>, vector<128x512xbf16>, vector<8x512xf32> -> vector<8x512xf32>
    %59 = arith.addf %55, %58 : vector<8x512xf32>
    %60 = vector.extract_strided_slice %59 {offsets = [0, 0], sizes = [8, 384], strides = [1, 1]} : vector<8x512xf32> to vector<8x384xf32>
    %cst_28 = arith.constant 5.000000e-01 : f32
    %61 = vector.broadcast %cst_28 : f32 to vector<8x384xf32>
    %62 = arith.mulf %61, %60 : vector<8x384xf32>
    %63 = math.tanh %62 : vector<8x384xf32>
    %cst_29 = arith.constant 5.000000e-01 : f32
    %64 = vector.broadcast %cst_29 : f32 to vector<8x384xf32>
    %65 = arith.mulf %64, %63 : vector<8x384xf32>
    %cst_30 = arith.constant 5.000000e-01 : f32
    %66 = vector.broadcast %cst_30 : f32 to vector<8x384xf32>
    %67 = arith.addf %65, %66 : vector<8x384xf32>
    %68 = vector.extract_strided_slice %67 {offsets = [0, 0], sizes = [8, 128], strides = [1, 1]} : vector<8x384xf32> to vector<8x128xf32>
    %69 = vector.extract_strided_slice %67 {offsets = [0, 128], sizes = [8, 128], strides = [1, 1]} : vector<8x384xf32> to vector<8x128xf32>
    %70 = vector.extract_strided_slice %67 {offsets = [0, 256], sizes = [8, 128], strides = [1, 1]} : vector<8x384xf32> to vector<8x128xf32>
    %71 = vector.extract_strided_slice %59 {offsets = [0, 384], sizes = [8, 128], strides = [1, 1]} : vector<8x512xf32> to vector<8x128xf32>
    %72 = math.tanh %71 : vector<8x128xf32>
    %73 = arith.mulf %69, %52 : vector<8x128xf32>
    %74 = arith.mulf %68, %72 : vector<8x128xf32>
    %75 = arith.addf %73, %74 : vector<8x128xf32>
    %76 = math.tanh %75 : vector<8x128xf32>
    %77 = arith.mulf %70, %76 : vector<8x128xf32>
    %c24 = arith.constant 24 : index
    %c0_31 = arith.constant 0 : index
    %78 = vector.load %arg7[%c24, %c0_31] : memref<64x512xf32, #tpu.memory_space<vmem>>, vector<8x512xf32>
    %79 = arith.truncf %77 : vector<8x128xf32> to vector<8x128xbf16>
    %c0_32 = arith.constant 0 : index
    %c0_33 = arith.constant 0 : index
    %80 = vector.load %arg2[%c0_32, %c0_33] : memref<128x512xbf16, #tpu.memory_space<vmem>>, vector<128x512xbf16>
    %cst_34 = arith.constant dense<0.000000e+00> : vector<8x512xf32>
    %81 = tpu.matmul %79, %80, %cst_34 {dimension_numbers = #tpu.dot_dimension_numbers<[1], [0], [0], [1], [0, 0, 1, 1], [], []>} : vector<8x128xbf16>, vector<128x512xbf16>, vector<8x512xf32> -> vector<8x512xf32>
    %82 = arith.addf %78, %81 : vector<8x512xf32>
    %83 = vector.extract_strided_slice %82 {offsets = [0, 0], sizes = [8, 384], strides = [1, 1]} : vector<8x512xf32> to vector<8x384xf32>
    %cst_35 = arith.constant 5.000000e-01 : f32
    %84 = vector.broadcast %cst_35 : f32 to vector<8x384xf32>
    %85 = arith.mulf %84, %83 : vector<8x384xf32>
    %86 = math.tanh %85 : vector<8x384xf32>
    %cst_36 = arith.constant 5.000000e-01 : f32
    %87 = vector.broadcast %cst_36 : f32 to vector<8x384xf32>
    %88 = arith.mulf %87, %86 : vector<8x384xf32>
    %cst_37 = arith.constant 5.000000e-01 : f32
    %89 = vector.broadcast %cst_37 : f32 to vector<8x384xf32>
    %90 = arith.addf %88, %89 : vector<8x384xf32>
    %91 = vector.extract_strided_slice %90 {offsets = [0, 0], sizes = [8, 128], strides = [1, 1]} : vector<8x384xf32> to vector<8x128xf32>
    %92 = vector.extract_strided_slice %90 {offsets = [0, 128], sizes = [8, 128], strides = [1, 1]} : vector<8x384xf32> to vector<8x128xf32>
    %93 = vector.extract_strided_slice %90 {offsets = [0, 256], sizes = [8, 128], strides = [1, 1]} : vector<8x384xf32> to vector<8x128xf32>
    %94 = vector.extract_strided_slice %82 {offsets = [0, 384], sizes = [8, 128], strides = [1, 1]} : vector<8x512xf32> to vector<8x128xf32>
    %95 = math.tanh %94 : vector<8x128xf32>
    %96 = arith.mulf %92, %75 : vector<8x128xf32>
    %97 = arith.mulf %91, %95 : vector<8x128xf32>
    %98 = arith.addf %96, %97 : vector<8x128xf32>
    %99 = math.tanh %98 : vector<8x128xf32>
    %100 = arith.mulf %93, %99 : vector<8x128xf32>
    %c32 = arith.constant 32 : index
    %c0_38 = arith.constant 0 : index
    %101 = vector.load %arg7[%c32, %c0_38] : memref<64x512xf32, #tpu.memory_space<vmem>>, vector<8x512xf32>
    %102 = arith.truncf %100 : vector<8x128xf32> to vector<8x128xbf16>
    %c0_39 = arith.constant 0 : index
    %c0_40 = arith.constant 0 : index
    %103 = vector.load %arg2[%c0_39, %c0_40] : memref<128x512xbf16, #tpu.memory_space<vmem>>, vector<128x512xbf16>
    %cst_41 = arith.constant dense<0.000000e+00> : vector<8x512xf32>
    %104 = tpu.matmul %102, %103, %cst_41 {dimension_numbers = #tpu.dot_dimension_numbers<[1], [0], [0], [1], [0, 0, 1, 1], [], []>} : vector<8x128xbf16>, vector<128x512xbf16>, vector<8x512xf32> -> vector<8x512xf32>
    %105 = arith.addf %101, %104 : vector<8x512xf32>
    %106 = vector.extract_strided_slice %105 {offsets = [0, 0], sizes = [8, 384], strides = [1, 1]} : vector<8x512xf32> to vector<8x384xf32>
    %cst_42 = arith.constant 5.000000e-01 : f32
    %107 = vector.broadcast %cst_42 : f32 to vector<8x384xf32>
    %108 = arith.mulf %107, %106 : vector<8x384xf32>
    %109 = math.tanh %108 : vector<8x384xf32>
    %cst_43 = arith.constant 5.000000e-01 : f32
    %110 = vector.broadcast %cst_43 : f32 to vector<8x384xf32>
    %111 = arith.mulf %110, %109 : vector<8x384xf32>
    %cst_44 = arith.constant 5.000000e-01 : f32
    %112 = vector.broadcast %cst_44 : f32 to vector<8x384xf32>
    %113 = arith.addf %111, %112 : vector<8x384xf32>
    %114 = vector.extract_strided_slice %113 {offsets = [0, 0], sizes = [8, 128], strides = [1, 1]} : vector<8x384xf32> to vector<8x128xf32>
    %115 = vector.extract_strided_slice %113 {offsets = [0, 128], sizes = [8, 128], strides = [1, 1]} : vector<8x384xf32> to vector<8x128xf32>
    %116 = vector.extract_strided_slice %113 {offsets = [0, 256], sizes = [8, 128], strides = [1, 1]} : vector<8x384xf32> to vector<8x128xf32>
    %117 = vector.extract_strided_slice %105 {offsets = [0, 384], sizes = [8, 128], strides = [1, 1]} : vector<8x512xf32> to vector<8x128xf32>
    %118 = math.tanh %117 : vector<8x128xf32>
    %119 = arith.mulf %115, %98 : vector<8x128xf32>
    %120 = arith.mulf %114, %118 : vector<8x128xf32>
    %121 = arith.addf %119, %120 : vector<8x128xf32>
    %122 = math.tanh %121 : vector<8x128xf32>
    %123 = arith.mulf %116, %122 : vector<8x128xf32>
    %c40 = arith.constant 40 : index
    %c0_45 = arith.constant 0 : index
    %124 = vector.load %arg7[%c40, %c0_45] : memref<64x512xf32, #tpu.memory_space<vmem>>, vector<8x512xf32>
    %125 = arith.truncf %123 : vector<8x128xf32> to vector<8x128xbf16>
    %c0_46 = arith.constant 0 : index
    %c0_47 = arith.constant 0 : index
    %126 = vector.load %arg2[%c0_46, %c0_47] : memref<128x512xbf16, #tpu.memory_space<vmem>>, vector<128x512xbf16>
    %cst_48 = arith.constant dense<0.000000e+00> : vector<8x512xf32>
    %127 = tpu.matmul %125, %126, %cst_48 {dimension_numbers = #tpu.dot_dimension_numbers<[1], [0], [0], [1], [0, 0, 1, 1], [], []>} : vector<8x128xbf16>, vector<128x512xbf16>, vector<8x512xf32> -> vector<8x512xf32>
    %128 = arith.addf %124, %127 : vector<8x512xf32>
    %129 = vector.extract_strided_slice %128 {offsets = [0, 0], sizes = [8, 384], strides = [1, 1]} : vector<8x512xf32> to vector<8x384xf32>
    %cst_49 = arith.constant 5.000000e-01 : f32
    %130 = vector.broadcast %cst_49 : f32 to vector<8x384xf32>
    %131 = arith.mulf %130, %129 : vector<8x384xf32>
    %132 = math.tanh %131 : vector<8x384xf32>
    %cst_50 = arith.constant 5.000000e-01 : f32
    %133 = vector.broadcast %cst_50 : f32 to vector<8x384xf32>
    %134 = arith.mulf %133, %132 : vector<8x384xf32>
    %cst_51 = arith.constant 5.000000e-01 : f32
    %135 = vector.broadcast %cst_51 : f32 to vector<8x384xf32>
    %136 = arith.addf %134, %135 : vector<8x384xf32>
    %137 = vector.extract_strided_slice %136 {offsets = [0, 0], sizes = [8, 128], strides = [1, 1]} : vector<8x384xf32> to vector<8x128xf32>
    %138 = vector.extract_strided_slice %136 {offsets = [0, 128], sizes = [8, 128], strides = [1, 1]} : vector<8x384xf32> to vector<8x128xf32>
    %139 = vector.extract_strided_slice %136 {offsets = [0, 256], sizes = [8, 128], strides = [1, 1]} : vector<8x384xf32> to vector<8x128xf32>
    %140 = vector.extract_strided_slice %128 {offsets = [0, 384], sizes = [8, 128], strides = [1, 1]} : vector<8x512xf32> to vector<8x128xf32>
    %141 = math.tanh %140 : vector<8x128xf32>
    %142 = arith.mulf %138, %121 : vector<8x128xf32>
    %143 = arith.mulf %137, %141 : vector<8x128xf32>
    %144 = arith.addf %142, %143 : vector<8x128xf32>
    %145 = math.tanh %144 : vector<8x128xf32>
    %146 = arith.mulf %139, %145 : vector<8x128xf32>
    %c48 = arith.constant 48 : index
    %c0_52 = arith.constant 0 : index
    %147 = vector.load %arg7[%c48, %c0_52] : memref<64x512xf32, #tpu.memory_space<vmem>>, vector<8x512xf32>
    %148 = arith.truncf %146 : vector<8x128xf32> to vector<8x128xbf16>
    %c0_53 = arith.constant 0 : index
    %c0_54 = arith.constant 0 : index
    %149 = vector.load %arg2[%c0_53, %c0_54] : memref<128x512xbf16, #tpu.memory_space<vmem>>, vector<128x512xbf16>
    %cst_55 = arith.constant dense<0.000000e+00> : vector<8x512xf32>
    %150 = tpu.matmul %148, %149, %cst_55 {dimension_numbers = #tpu.dot_dimension_numbers<[1], [0], [0], [1], [0, 0, 1, 1], [], []>} : vector<8x128xbf16>, vector<128x512xbf16>, vector<8x512xf32> -> vector<8x512xf32>
    %151 = arith.addf %147, %150 : vector<8x512xf32>
    %152 = vector.extract_strided_slice %151 {offsets = [0, 0], sizes = [8, 384], strides = [1, 1]} : vector<8x512xf32> to vector<8x384xf32>
    %cst_56 = arith.constant 5.000000e-01 : f32
    %153 = vector.broadcast %cst_56 : f32 to vector<8x384xf32>
    %154 = arith.mulf %153, %152 : vector<8x384xf32>
    %155 = math.tanh %154 : vector<8x384xf32>
    %cst_57 = arith.constant 5.000000e-01 : f32
    %156 = vector.broadcast %cst_57 : f32 to vector<8x384xf32>
    %157 = arith.mulf %156, %155 : vector<8x384xf32>
    %cst_58 = arith.constant 5.000000e-01 : f32
    %158 = vector.broadcast %cst_58 : f32 to vector<8x384xf32>
    %159 = arith.addf %157, %158 : vector<8x384xf32>
    %160 = vector.extract_strided_slice %159 {offsets = [0, 0], sizes = [8, 128], strides = [1, 1]} : vector<8x384xf32> to vector<8x128xf32>
    %161 = vector.extract_strided_slice %159 {offsets = [0, 128], sizes = [8, 128], strides = [1, 1]} : vector<8x384xf32> to vector<8x128xf32>
    %162 = vector.extract_strided_slice %159 {offsets = [0, 256], sizes = [8, 128], strides = [1, 1]} : vector<8x384xf32> to vector<8x128xf32>
    %163 = vector.extract_strided_slice %151 {offsets = [0, 384], sizes = [8, 128], strides = [1, 1]} : vector<8x512xf32> to vector<8x128xf32>
    %164 = math.tanh %163 : vector<8x128xf32>
    %165 = arith.mulf %161, %144 : vector<8x128xf32>
    %166 = arith.mulf %160, %164 : vector<8x128xf32>
    %167 = arith.addf %165, %166 : vector<8x128xf32>
    %168 = math.tanh %167 : vector<8x128xf32>
    %169 = arith.mulf %162, %168 : vector<8x128xf32>
    %c56 = arith.constant 56 : index
    %c0_59 = arith.constant 0 : index
    %170 = vector.load %arg7[%c56, %c0_59] : memref<64x512xf32, #tpu.memory_space<vmem>>, vector<8x512xf32>
    %171 = arith.truncf %169 : vector<8x128xf32> to vector<8x128xbf16>
    %c0_60 = arith.constant 0 : index
    %c0_61 = arith.constant 0 : index
    %172 = vector.load %arg2[%c0_60, %c0_61] : memref<128x512xbf16, #tpu.memory_space<vmem>>, vector<128x512xbf16>
    %cst_62 = arith.constant dense<0.000000e+00> : vector<8x512xf32>
    %173 = tpu.matmul %171, %172, %cst_62 {dimension_numbers = #tpu.dot_dimension_numbers<[1], [0], [0], [1], [0, 0, 1, 1], [], []>} : vector<8x128xbf16>, vector<128x512xbf16>, vector<8x512xf32> -> vector<8x512xf32>
    %174 = arith.addf %170, %173 : vector<8x512xf32>
    %175 = vector.extract_strided_slice %174 {offsets = [0, 0], sizes = [8, 384], strides = [1, 1]} : vector<8x512xf32> to vector<8x384xf32>
    %cst_63 = arith.constant 5.000000e-01 : f32
    %176 = vector.broadcast %cst_63 : f32 to vector<8x384xf32>
    %177 = arith.mulf %176, %175 : vector<8x384xf32>
    %178 = math.tanh %177 : vector<8x384xf32>
    %cst_64 = arith.constant 5.000000e-01 : f32
    %179 = vector.broadcast %cst_64 : f32 to vector<8x384xf32>
    %180 = arith.mulf %179, %178 : vector<8x384xf32>
    %cst_65 = arith.constant 5.000000e-01 : f32
    %181 = vector.broadcast %cst_65 : f32 to vector<8x384xf32>
    %182 = arith.addf %180, %181 : vector<8x384xf32>
    %183 = vector.extract_strided_slice %182 {offsets = [0, 0], sizes = [8, 128], strides = [1, 1]} : vector<8x384xf32> to vector<8x128xf32>
    %184 = vector.extract_strided_slice %182 {offsets = [0, 128], sizes = [8, 128], strides = [1, 1]} : vector<8x384xf32> to vector<8x128xf32>
    %185 = vector.extract_strided_slice %182 {offsets = [0, 256], sizes = [8, 128], strides = [1, 1]} : vector<8x384xf32> to vector<8x128xf32>
    %186 = vector.extract_strided_slice %174 {offsets = [0, 384], sizes = [8, 128], strides = [1, 1]} : vector<8x512xf32> to vector<8x128xf32>
    %187 = math.tanh %186 : vector<8x128xf32>
    %188 = arith.mulf %184, %167 : vector<8x128xf32>
    %189 = arith.mulf %183, %187 : vector<8x128xf32>
    %190 = arith.addf %188, %189 : vector<8x128xf32>
    %191 = math.tanh %190 : vector<8x128xf32>
    %192 = arith.mulf %185, %191 : vector<8x128xf32>
    %193 = arith.truncf %192 : vector<8x128xf32> to vector<8x128xbf16>
    %c0_66 = arith.constant 0 : index
    %c0_67 = arith.constant 0 : index
    %194 = vector.load %arg4[%c0_66, %c0_67] : memref<128x128xbf16, #tpu.memory_space<vmem>>, vector<128x128xbf16>
    %cst_68 = arith.constant dense<0.000000e+00> : vector<8x128xf32>
    %195 = tpu.matmul %193, %194, %cst_68 {dimension_numbers = #tpu.dot_dimension_numbers<[1], [0], [0], [1], [0, 0, 1, 1], [], []>} : vector<8x128xbf16>, vector<128x128xbf16>, vector<8x128xf32> -> vector<8x128xf32>
    %c0_69 = arith.constant 0 : index
    %c0_70 = arith.constant 0 : index
    %196 = vector.load %arg5[%c0_69, %c0_70] : memref<1x128xf32, #tpu.memory_space<vmem>>, vector<1x128xf32>
    %197 = vector.broadcast %196 : vector<1x128xf32> to vector<8x128xf32>
    %198 = arith.addf %195, %197 : vector<8x128xf32>
    %c0_71 = arith.constant 0 : index
    %c0_72 = arith.constant 0 : index
    %199 = vector.load %arg6[%c0_71, %c0_72] : memref<8x128xf32, #tpu.memory_space<vmem>>, vector<8x128xf32>
    tpu.vector_store %arg6[%c0_71, %c0_72], %198 {strides = array<i32>} : memref<8x128xf32, #tpu.memory_space<vmem>>, vector<8x128xf32>,
    return
  }
}

</mosaic_0001>

<llo_original>
// kernel: tpu_custom_call.1
$region0: #{tpu_custom_call.1}
  #allocation0 [shape = 'u32[]', space=smem, size = 0x4, offset = 0x4, fixed_abs, tag = 'smem constant byte address 0x4 - core index']
  #allocation1 [shape = 'u32[144,128]{1,0:T(1,128)}', space=vmem, size = 0x12000, scoped, tag = 'internal scratch']
  #allocation2 [shape = 'f32[64,512]{1,0:T(8,128)}', space=vmem, size = 0x20000, scoped, tag = 'scratch operand']
  %s0 = inlined_call_operand.vmem [shape: bf16[64,4], index: 0, kind: input, shape index: {}]
  %s1 = inlined_call_operand.vmem [shape: bf16[4,512], index: 1, kind: input, shape index: {}]
  %s2 = inlined_call_operand.hbm [shape: bf16[128,512], index: 2, kind: input, shape index: {}]
  %s3 = inlined_call_operand.vmem [shape: f32[1,512], index: 3, kind: input, shape index: {}]
  %s4 = inlined_call_operand.hbm [shape: bf16[128,128], index: 4, kind: input, shape index: {}]
  %s5 = inlined_call_operand.vmem [shape: f32[1,128], index: 5, kind: input, shape index: {}]
  %s6 = inlined_call_operand.hbm [shape: f32[8,128], index: 6, kind: output, shape index: {}]
  %s7 = sld [smem:[#allocation0]]
  $region42: #{tpu_custom_call.1} parent=0
    _
  %s9 = ssub.s32 1, %s7
  %s10 = scalar_select 0, %s9, %s7
  $region1: #{tpu_custom_call.1} parent=0
    #allocation3 [shape = 'u8[131072]{0}', space=vmem, size = 0x20000, scoped, tag = 'input window, operand 2, single buffered']
    #allocation4 [shape = 's32[1]{0}', space=sflag, size = 0x4, scoped, tag = 'scoped memory for tpu_custom_call.1']
    #allocation5 [shape = 's32[1]{0}', space=sflag, size = 0x4, scoped, tag = 'scoped memory for tpu_custom_call.1']
    #allocation6 [shape = 'u8[32768]{0}', space=vmem, size = 0x8000, scoped, tag = 'input window, operand 4, single buffered']
    #allocation7 [shape = 's32[1]{0}', space=sflag, size = 0x4, scoped, tag = 'scoped memory for tpu_custom_call.1']
    #allocation8 [shape = 'u8[4096]{0}', space=vmem, size = 0x1000, scoped, tag = 'output window, operand 0, single buffered']
    %11 = vsyncpa [#allocation4], 0
    %12 = vsyncpa [#allocation7], 0
    %13 = vsyncpa [#allocation5], 0
    // Predicated region
    $region2: #{tpu_custom_call.1} parent=1 // pred_check
      _
    $region3: #{tpu_custom_call.1} parent=1 // pred_check_branch
      %15 = sbr.rel (0) target = $region5
    $region4: #{tpu_custom_call.1} parent=1 // pred_region
      _
    $region5: #{tpu_custom_call.1} parent=1 // pred_fallthru
      _
    // Predicated region
    $region6: #{tpu_custom_call.1} parent=1 // pred_check
      _
    $region7: #{tpu_custom_call.1} parent=1 // pred_check_branch
      %17 = sbr.rel (0) target = $region9
    $region8: #{tpu_custom_call.1} parent=1 // pred_region
      _
    $region9: #{tpu_custom_call.1} parent=1 // pred_fallthru
      _
    // Predicated region
    $region10: #{tpu_custom_call.1} parent=1 // pred_check
      _
    $region11: #{tpu_custom_call.1} parent=1 // pred_check_branch
      %19 = sbr.rel (0) target = $region13
    $region12: #{tpu_custom_call.1} parent=1 // pred_region
      %s21 = ssub.s32 4096, 4096
      %22 = vsyncadd [#allocation4], %s21
      %s23 = sshll.u32 [#allocation3], 4
      %s24 = int_to_ptr.vmem [resolvable:$true] %s23
      %29 = dma.hbm_to_vmem [thread:$0]  %s2, 4096, %s24, [#allocation4], 256, 256, 16
    $region13: #{tpu_custom_call.1} parent=1 // pred_fallthru
      _
    // Predicated region
    $region14: #{tpu_custom_call.1} parent=1 // pred_check
      _
    $region15: #{tpu_custom_call.1} parent=1 // pred_check_branch
      %31 = sbr.rel (0) target = $region17
    $region16: #{tpu_custom_call.1} parent=1 // pred_region
      _
    $region17: #{tpu_custom_call.1} parent=1 // pred_fallthru
      _
    // Predicated region
    $region18: #{tpu_custom_call.1} parent=1 // pred_check
      _
    $region19: #{tpu_custom_call.1} parent=1 // pred_check_branch
      %33 = sbr.rel (0) target = $region21
    $region20: #{tpu_custom_call.1} parent=1 // pred_region
      %s35 = ssub.s32 1024, 1024
      %36 = vsyncadd [#allocation7], %s35
      %s37 = sshll.u32 [#allocation6], 4
      %s38 = int_to_ptr.vmem [resolvable:$true] %s37
      %43 = dma.hbm_to_vmem [thread:$0]  %s4, 1024, %s38, [#allocation7], 64, 64, 4
    $region21: #{tpu_custom_call.1} parent=1 // pred_fallthru
      _
    // Predicated region
    $region22: #{tpu_custom_call.1} parent=1 // pred_check
      _
    $region23: #{tpu_custom_call.1} parent=1 // pred_check_branch
      %45 = sbr.rel (0) target = $region25
    $region24: #{tpu_custom_call.1} parent=1 // pred_region
      _
    $region25: #{tpu_custom_call.1} parent=1 // pred_fallthru
      _
    // Predicated region
    $region26: #{tpu_custom_call.1} parent=1 // pred_check
      _
    $region27: #{tpu_custom_call.1} parent=1 // pred_check_branch
      %47 = sbr.rel (0) target = $region29
    $region28: #{tpu_custom_call.1} parent=1 // pred_region
      %48 = dma.done [#allocation4], 4096
    $region29: #{tpu_custom_call.1} parent=1 // pred_fallthru
      _
    // Predicated region
    $region30: #{tpu_custom_call.1} parent=1 // pred_check
      _
    $region31: #{tpu_custom_call.1} parent=1 // pred_check_branch
      %50 = sbr.rel (0) target = $region33
    $region32: #{tpu_custom_call.1} parent=1 // pred_region
      %51 = dma.done [#allocation7], 1024
    $region33: #{tpu_custom_call.1} parent=1 // pred_fallthru
      _
    %v53 = vld [vmem:[%s0] sm:$0xf]
    %v54 = vld [vmem:[%s0 + $0x4] sm:$0xf]
    %v55 = vld [vmem:[%s0 + $0x8] sm:$0xf]
    %v56 = vld [vmem:[%s0 + $0xc] sm:$0xf]
    %v57 = vld [vmem:[%s0 + $0x10] sm:$0xf]
    %v58 = vld [vmem:[%s0 + $0x14] sm:$0xf]
    %v59 = vld [vmem:[%s0 + $0x18] sm:$0xf]
    %v60 = vld [vmem:[%s0 + $0x1c] sm:$0xf]
    %v61 = vld [vmem:[%s1] sm:$0xff]
    %v62 = vld [vmem:[%s3] sm:$0xf]
    %v64 = vlaneseq
    %v65 = vshrl.u32 %v64, 7
    %v66 = vsub.s32 0, %v65
    %v67 = vrot.slane %v62, %v66
    %v68 = vlaneseq
    %v69 = vshrl.u32 %v68, 7
    %v70 = vsub.s32 1, %v69
    %v71 = vrot.slane %v62, %v70
    %v72 = vlaneseq
    %v73 = vshrl.u32 %v72, 7
    %v74 = vsub.s32 2, %v73
    %v75 = vrot.slane %v62, %v74
    %v76 = vlaneseq
    %v77 = vshrl.u32 %v76, 7
    %v78 = vsub.s32 3, %v77
    %v79 = vrot.slane %v62, %v78
    %v92 = vunpack.c.l.b16 %v53
    %v93 = vunpack.c.l.b16 %v54
    %v94 = vunpack.c.l.b16 %v55
    %v95 = vunpack.c.l.b16 %v56
    %v96 = vunpack.c.l.b16 %v57
    %v97 = vunpack.c.l.b16 %v58
    %v98 = vunpack.c.l.b16 %v59
    %v99 = vunpack.c.l.b16 %v60
    %v100 = vpack.c.b16 %v93, %v92
    %v101 = vpack.c.b16 %v95, %v94
    %v102 = vpack.c.b16 %v97, %v96
    %v103 = vpack.c.b16 %v99, %v98
    %v105 = vcombine.high %v61, %v61
    %v107 = vunpack.c.l.s4 1983009808
    %v108 = vunpack.c.0.s8 %v107
    %v109 = vlaneseq
    %v110 = vshrl.u32 %v109, 7
    %v111 = vsub.s32 %v108, %v110
    %v112 = vrot.slane %v61, %v111
    %v114 = vunpack.c.l.s4 1983009808
    %v115 = vunpack.c.0.s8 %v114
    %v116 = vlaneseq
    %v117 = vshrl.u32 %v116, 7
    %v118 = vsub.s32 %v115, %v117
    %v119 = vrot.slane %v105, %v118
    %v120 = vcombine.high %v112, %v112
    %v121 = vcombine.high %v119, %v119
    %vm122 = vcmask 31744
    %v124 = vsel %vm122, %v100, 0
    %v127 = vsel %vm122, %v101, 0
    %v130 = vsel %vm122, %v102, 0
    %v133 = vsel %vm122, %v103, 0
    %vm135 = vcmask 1041408
    %v137 = vsel %vm135, %v112, 0
    %v140 = vsel %vm135, %v120, 0
    %v143 = vsel %vm135, %v119, 0
    %v146 = vsel %vm135, %v121, 0
    %148 = vmatprep.subr.bf16.mxu0 %v140
    %149 = vmatpush1.bf16.msra.mxu0 %v137
    %150 = vmatprep.subr.bf16.mxu0 0
    %151 = vmatpush1.bf16.msra.mxu0 0
    %152 = vmatprep.subr.bf16.mxu0 0
    %153 = vmatpush1.bf16.msra.mxu0 0
    %154 = vmatprep.subr.bf16.mxu0 0
    %155 = vmatpush1.bf16.msra.mxu0 0
    %156 = vmatprep.subr.bf16.mxu0 0
    %157 = vmatpush1.bf16.msra.mxu0 0
    %158 = vmatprep.subr.bf16.mxu0 0
    %159 = vmatpush1.bf16.msra.mxu0 0
    %160 = vmatprep.subr.bf16.mxu0 0
    %161 = vmatpush1.bf16.msra.mxu0 0
    %162 = vmatprep.subr.bf16.mxu0 0
    %163 = vmatpush1.bf16.msra.mxu0 0
    %164 = vmatprep.subr.bf16.mxu0 0
    %165 = vmatpush1.bf16.msra.mxu0 0
    %166 = vmatprep.subr.bf16.mxu0 0
    %167 = vmatpush1.bf16.msra.mxu0 0
    %168 = vmatprep.subr.bf16.mxu0 0
    %169 = vmatpush1.bf16.msra.mxu0 0
    %170 = vmatprep.subr.bf16.mxu0 0
    %171 = vmatpush1.bf16.msra.mxu0 0
    %172 = vmatprep.subr.bf16.mxu0 0
    %173 = vmatpush1.bf16.msra.mxu0 0
    %174 = vmatprep.subr.bf16.mxu0 0
    %175 = vmatpush1.bf16.msra.mxu0 0
    %176 = vmatprep.subr.bf16.mxu0 0
    %177 = vmatpush1.bf16.msra.mxu0 0
    %178 = vmatprep.subr.bf16.mxu0 0
    %179 = vmatpush1.bf16.msra.mxu0 0
    %180 = vmatprep.mubr.bf16.mxu0 0
    %181 = vmatmul.mubr.bf16.gmra.mrb[0].mxu0 %v124
    %v182 = vpop.f32.mrb[0].mxu0
    %v183 = vadd.f32 %v67, %v182
    %v184 = vpop.f32.mrb[0].mxu0
    %v185 = vadd.f32 %v71, %v184
    %v186 = vpop.f32.mrb[0].mxu0
    %v187 = vadd.f32 %v67, %v186
    %v188 = vpop.f32.mrb[0].mxu0
    %v189 = vadd.f32 %v71, %v188
    %190 = vmatprep.mubr.bf16.mxu0 0
    %191 = vmatmul.mubr.bf16.gmra.mrb[0].mxu0 %v127
    %v192 = vpop.f32.mrb[0].mxu0
    %v193 = vadd.f32 %v67, %v192
    %v194 = vpop.f32.mrb[0].mxu0
    %v195 = vadd.f32 %v71, %v194
    %v196 = vpop.f32.mrb[0].mxu0
    %v197 = vadd.f32 %v67, %v196
    %v198 = vpop.f32.mrb[0].mxu0
    %v199 = vadd.f32 %v71, %v198
    %200 = vmatprep.mubr.bf16.mxu0 0
    %201 = vmatmul.mubr.bf16.gmra.mrb[0].mxu0 %v130
    %v202 = vpop.f32.mrb[0].mxu0
    %v203 = vadd.f32 %v67, %v202
    %v204 = vpop.f32.mrb[0].mxu0
    %v205 = vadd.f32 %v71, %v204
    %v206 = vpop.f32.mrb[0].mxu0
    %v207 = vadd.f32 %v67, %v206
    %v208 = vpop.f32.mrb[0].mxu0
    %v209 = vadd.f32 %v71, %v208
    %210 = vmatprep.mubr.bf16.mxu0 0
    %211 = vmatmul.mubr.bf16.gmra.mrb[0].mxu0 %v133
    %v212 = vpop.f32.mrb[0].mxu0
    %v213 = vadd.f32 %v67, %v212
    %v214 = vpop.f32.mrb[0].mxu0
    %v215 = vadd.f32 %v71, %v214
    %v216 = vpop.f32.mrb[0].mxu0
    %v217 = vadd.f32 %v67, %v216
    %v218 = vpop.f32.mrb[0].mxu0
    %v219 = vadd.f32 %v71, %v218
    %220 = vdwg.mxu0
    %221 = vmatprep.subr.bf16.mxu0 %v146
    %222 = vmatpush1.bf16.msra.mxu0 %v143
    %223 = vmatprep.subr.bf16.mxu0 0
    %224 = vmatpush1.bf16.msra.mxu0 0
    %225 = vmatprep.subr.bf16.mxu0 0
    %226 = vmatpush1.bf16.msra.mxu0 0
    %227 = vmatprep.subr.bf16.mxu0 0
    %228 = vmatpush1.bf16.msra.mxu0 0
    %229 = vmatprep.subr.bf16.mxu0 0
    %230 = vmatpush1.bf16.msra.mxu0 0
    %231 = vmatprep.subr.bf16.mxu0 0
    %232 = vmatpush1.bf16.msra.mxu0 0
    %233 = vmatprep.subr.bf16.mxu0 0
    %234 = vmatpush1.bf16.msra.mxu0 0
    %235 = vmatprep.subr.bf16.mxu0 0
    %236 = vmatpush1.bf16.msra.mxu0 0
    %237 = vmatprep.subr.bf16.mxu0 0
    %238 = vmatpush1.bf16.msra.mxu0 0
    %239 = vmatprep.subr.bf16.mxu0 0
    %240 = vmatpush1.bf16.msra.mxu0 0
    %241 = vmatprep.subr.bf16.mxu0 0
    %242 = vmatpush1.bf16.msra.mxu0 0
    %243 = vmatprep.subr.bf16.mxu0 0
    %244 = vmatpush1.bf16.msra.mxu0 0
    %245 = vmatprep.subr.bf16.mxu0 0
    %246 = vmatpush1.bf16.msra.mxu0 0
    %247 = vmatprep.subr.bf16.mxu0 0
    %248 = vmatpush1.bf16.msra.mxu0 0
    %249 = vmatprep.subr.bf16.mxu0 0
    %250 = vmatpush1.bf16.msra.mxu0 0
    %251 = vmatprep.subr.bf16.mxu0 0
    %252 = vmatpush1.bf16.msra.mxu0 0
    %253 = vmatprep.mubr.bf16.mxu0 0
    %254 = vmatmul.mubr.bf16.gmra.mrb[0].mxu0 %v124
    %v255 = vpop.f32.mrb[0].mxu0
    %v256 = vadd.f32 %v75, %v255
    %v257 = vpop.f32.mrb[0].mxu0
    %v258 = vadd.f32 %v79, %v257
    %v259 = vpop.f32.mrb[0].mxu0
    %v260 = vadd.f32 %v75, %v259
    %v261 = vpop.f32.mrb[0].mxu0
    %v262 = vadd.f32 %v79, %v261
    %263 = vmatprep.mubr.bf16.mxu0 0
    %264 = vmatmul.mubr.bf16.gmra.mrb[0].mxu0 %v127
    %v265 = vpop.f32.mrb[0].mxu0
    %v266 = vadd.f32 %v75, %v265
    %v267 = vpop.f32.mrb[0].mxu0
    %v268 = vadd.f32 %v79, %v267
    %v269 = vpop.f32.mrb[0].mxu0
    %v270 = vadd.f32 %v75, %v269
    %v271 = vpop.f32.mrb[0].mxu0
    %v272 = vadd.f32 %v79, %v271
    %273 = vmatprep.mubr.bf16.mxu0 0
    %274 = vmatmul.mubr.bf16.gmra.mrb[0].mxu0 %v130
    %v275 = vpop.f32.mrb[0].mxu0
    %v276 = vadd.f32 %v75, %v275
    %v277 = vpop.f32.mrb[0].mxu0
    %v278 = vadd.f32 %v79, %v277
    %v279 = vpop.f32.mrb[0].mxu0
    %v280 = vadd.f32 %v75, %v279
    %v281 = vpop.f32.mrb[0].mxu0
    %v282 = vadd.f32 %v79, %v281
    %283 = vmatprep.mubr.bf16.mxu0 0
    %284 = vmatmul.mubr.bf16.gmra.mrb[0].mxu0 %v133
    %v285 = vpop.f32.mrb[0].mxu0
    %v286 = vadd.f32 %v75, %v285
    %v287 = vpop.f32.mrb[0].mxu0
    %v288 = vadd.f32 %v79, %v287
    %v289 = vpop.f32.mrb[0].mxu0
    %v290 = vadd.f32 %v75, %v289
    %v291 = vpop.f32.mrb[0].mxu0
    %v292 = vadd.f32 %v79, %v291
    %293 = vdwg.mxu0
    %294 = vst [vmem:[#allocation2] sm:$0xff] %v183
    %295 = vst [vmem:[#allocation2 + $0x8] sm:$0xff] %v185
    %296 = vst [vmem:[#allocation2 + $0x10] sm:$0xff] %v256
    %297 = vst [vmem:[#allocation2 + $0x18] sm:$0xff] %v258
    %298 = vst [vmem:[#allocation2 + $0x20] sm:$0xff] %v187
    %299 = vst [vmem:[#allocation2 + $0x28] sm:$0xff] %v189
    %300 = vst [vmem:[#allocation2 + $0x30] sm:$0xff] %v260
    %301 = vst [vmem:[#allocation2 + $0x38] sm:$0xff] %v262
    %302 = vst [vmem:[#allocation2 + $0x40] sm:$0xff] %v193
    %303 = vst [vmem:[#allocation2 + $0x48] sm:$0xff] %v195
    %304 = vst [vmem:[#allocation2 + $0x50] sm:$0xff] %v266
    %305 = vst [vmem:[#allocation2 + $0x58] sm:$0xff] %v268
    %306 = vst [vmem:[#allocation2 + $0x60] sm:$0xff] %v197
    %307 = vst [vmem:[#allocation2 + $0x68] sm:$0xff] %v199
    %308 = vst [vmem:[#allocation2 + $0x70] sm:$0xff] %v270
    %309 = vst [vmem:[#allocation2 + $0x78] sm:$0xff] %v272
    %310 = vst [vmem:[#allocation2 + $0x80] sm:$0xff] %v203
    %311 = vst [vmem:[#allocation2 + $0x88] sm:$0xff] %v205
    %312 = vst [vmem:[#allocation2 + $0x90] sm:$0xff] %v276
    %313 = vst [vmem:[#allocation2 + $0x98] sm:$0xff] %v278
    %314 = vst [vmem:[#allocation2 + $0xa0] sm:$0xff] %v207
    %315 = vst [vmem:[#allocation2 + $0xa8] sm:$0xff] %v209
    %316 = vst [vmem:[#allocation2 + $0xb0] sm:$0xff] %v280
    %317 = vst [vmem:[#allocation2 + $0xb8] sm:$0xff] %v282
    %318 = vst [vmem:[#allocation2 + $0xc0] sm:$0xff] %v213
    %319 = vst [vmem:[#allocation2 + $0xc8] sm:$0xff] %v215
    %320 = vst [vmem:[#allocation2 + $0xd0] sm:$0xff] %v286
    %321 = vst [vmem:[#allocation2 + $0xd8] sm:$0xff] %v288
    %322 = vst [vmem:[#allocation2 + $0xe0] sm:$0xff] %v217
    %323 = vst [vmem:[#allocation2 + $0xe8] sm:$0xff] %v219
    %324 = vst [vmem:[#allocation2 + $0xf0] sm:$0xff] %v290
    %325 = vst [vmem:[#allocation2 + $0xf8] sm:$0xff] %v292
    %v326 = vld [vmem:[#allocation2] sm:$0xff]
    %v327 = vld [vmem:[#allocation2 + $0x8] sm:$0xff]
    %v328 = vld [vmem:[#allocation2 + $0x10] sm:$0xff]
    %v329 = vld [vmem:[#allocation2 + $0x18] sm:$0xff]
    %v330 = vld [vmem:[#allocation3] sm:$0xff]
    %v331 = vld [vmem:[#allocation3 + $0x8] sm:$0xff]
    %v332 = vld [vmem:[#allocation3 + $0x10] sm:$0xff]
    %v333 = vld [vmem:[#allocation3 + $0x18] sm:$0xff]
    %v334 = vld [vmem:[#allocation3 + $0x20] sm:$0xff]
    %v335 = vld [vmem:[#allocation3 + $0x28] sm:$0xff]
    %v336 = vld [vmem:[#allocation3 + $0x30] sm:$0xff]
    %v337 = vld [vmem:[#allocation3 + $0x38] sm:$0xff]
    %v338 = vld [vmem:[#allocation3 + $0x40] sm:$0xff]
    %v339 = vld [vmem:[#allocation3 + $0x48] sm:$0xff]
    %v340 = vld [vmem:[#allocation3 + $0x50] sm:$0xff]
    %v341 = vld [vmem:[#allocation3 + $0x58] sm:$0xff]
    %v342 = vld [vmem:[#allocation3 + $0x60] sm:$0xff]
    %v343 = vld [vmem:[#allocation3 + $0x68] sm:$0xff]
    %v344 = vld [vmem:[#allocation3 + $0x70] sm:$0xff]
    %v345 = vld [vmem:[#allocation3 + $0x78] sm:$0xff]
    %v346 = vld [vmem:[#allocation3 + $0x80] sm:$0xff]
    %v347 = vld [vmem:[#allocation3 + $0x88] sm:$0xff]
    %v348 = vld [vmem:[#allocation3 + $0x90] sm:$0xff]
    %v349 = vld [vmem:[#allocation3 + $0x98] sm:$0xff]
    %v350 = vld [vmem:[#allocation3 + $0xa0] sm:$0xff]
    %v351 = vld [vmem:[#allocation3 + $0xa8] sm:$0xff]
    %v352 = vld [vmem:[#allocation3 + $0xb0] sm:$0xff]
    %v353 = vld [vmem:[#allocation3 + $0xb8] sm:$0xff]
    %v354 = vld [vmem:[#allocation3 + $0xc0] sm:$0xff]
    %v355 = vld [vmem:[#allocation3 + $0xc8] sm:$0xff]
    %v356 = vld [vmem:[#allocation3 + $0xd0] sm:$0xff]
    %v357 = vld [vmem:[#allocation3 + $0xd8] sm:$0xff]
    %v358 = vld [vmem:[#allocation3 + $0xe0] sm:$0xff]
    %v359 = vld [vmem:[#allocation3 + $0xe8] sm:$0xff]
    %v360 = vld [vmem:[#allocation3 + $0xf0] sm:$0xff]
    %v361 = vld [vmem:[#allocation3 + $0xf8] sm:$0xff]
    %v394 = vunpack.c.l.b16 %v330
    %v395 = vunpack.c.h.b16 %v330
    %v396 = vunpack.c.l.b16 %v331
    %v397 = vunpack.c.h.b16 %v331
    %v398 = vunpack.c.l.b16 %v332
    %v399 = vunpack.c.h.b16 %v332
    %v400 = vunpack.c.l.b16 %v333
    %v401 = vunpack.c.h.b16 %v333
    %v402 = vunpack.c.l.b16 %v334
    %v403 = vunpack.c.h.b16 %v334
    %v404 = vunpack.c.l.b16 %v335
    %v405 = vunpack.c.h.b16 %v335
    %v406 = vunpack.c.l.b16 %v336
    %v407 = vunpack.c.h.b16 %v336
    %v408 = vunpack.c.l.b16 %v337
    %v409 = vunpack.c.h.b16 %v337
    %v410 = vunpack.c.l.b16 %v338
    %v411 = vunpack.c.h.b16 %v338
    %v412 = vunpack.c.l.b16 %v339
    %v413 = vunpack.c.h.b16 %v339
    %v414 = vunpack.c.l.b16 %v340
    %v415 = vunpack.c.h.b16 %v340
    %v416 = vunpack.c.l.b16 %v341
    %v417 = vunpack.c.h.b16 %v341
    %v418 = vunpack.c.l.b16 %v342
    %v419 = vunpack.c.h.b16 %v342
    %v420 = vunpack.c.l.b16 %v343
    %v421 = vunpack.c.h.b16 %v343
    %v422 = vunpack.c.l.b16 %v344
    %v423 = vunpack.c.h.b16 %v344
    %v424 = vunpack.c.l.b16 %v345
    %v425 = vunpack.c.h.b16 %v345
    %v426 = vunpack.c.l.b16 %v346
    %v427 = vunpack.c.h.b16 %v346
    %v428 = vunpack.c.l.b16 %v347
    %v429 = vunpack.c.h.b16 %v347
    %v430 = vunpack.c.l.b16 %v348
    %v431 = vunpack.c.h.b16 %v348
    %v432 = vunpack.c.l.b16 %v349
    %v433 = vunpack.c.h.b16 %v349
    %v434 = vunpack.c.l.b16 %v350
    %v435 = vunpack.c.h.b16 %v350
    %v436 = vunpack.c.l.b16 %v351
    %v437 = vunpack.c.h.b16 %v351
    %v438 = vunpack.c.l.b16 %v352
    %v439 = vunpack.c.h.b16 %v352
    %v440 = vunpack.c.l.b16 %v353
    %v441 = vunpack.c.h.b16 %v353
    %v442 = vunpack.c.l.b16 %v354
    %v443 = vunpack.c.h.b16 %v354
    %v444 = vunpack.c.l.b16 %v355
    %v445 = vunpack.c.h.b16 %v355
    %v446 = vunpack.c.l.b16 %v356
    %v447 = vunpack.c.h.b16 %v356
    %v448 = vunpack.c.l.b16 %v357
    %v449 = vunpack.c.h.b16 %v357
    %v450 = vunpack.c.l.b16 %v358
    %v451 = vunpack.c.h.b16 %v358
    %v452 = vunpack.c.l.b16 %v359
    %v453 = vunpack.c.h.b16 %v359
    %v454 = vunpack.c.l.b16 %v360
    %v455 = vunpack.c.h.b16 %v360
    %v456 = vunpack.c.l.b16 %v361
    %v457 = vunpack.c.h.b16 %v361
    %v458 = vpack.c.b16 %v398, %v394
    %v459 = vpack.c.b16 %v399, %v395
    %v460 = vpack.c.b16 %v400, %v396
    %v461 = vpack.c.b16 %v401, %v397
    %v462 = vpack.c.b16 %v406, %v402
    %v463 = vpack.c.b16 %v407, %v403
    %v464 = vpack.c.b16 %v408, %v404
    %v465 = vpack.c.b16 %v409, %v405
    %v466 = vpack.c.b16 %v414, %v410
    %v467 = vpack.c.b16 %v415, %v411
    %v468 = vpack.c.b16 %v416, %v412
    %v469 = vpack.c.b16 %v417, %v413
    %v470 = vpack.c.b16 %v422, %v418
    %v471 = vpack.c.b16 %v423, %v419
    %v472 = vpack.c.b16 %v424, %v420
    %v473 = vpack.c.b16 %v425, %v421
    %v474 = vpack.c.b16 %v430, %v426
    %v475 = vpack.c.b16 %v431, %v427
    %v476 = vpack.c.b16 %v432, %v428
    %v477 = vpack.c.b16 %v433, %v429
    %v478 = vpack.c.b16 %v438, %v434
    %v479 = vpack.c.b16 %v439, %v435
    %v480 = vpack.c.b16 %v440, %v436
    %v481 = vpack.c.b16 %v441, %v437
    %v482 = vpack.c.b16 %v446, %v442
    %v483 = vpack.c.b16 %v447, %v443
    %v484 = vpack.c.b16 %v448, %v444
    %v485 = vpack.c.b16 %v449, %v445
    %v486 = vpack.c.b16 %v454, %v450
    %v487 = vpack.c.b16 %v455, %v451
    %v488 = vpack.c.b16 %v456, %v452
    %v489 = vpack.c.b16 %v457, %v453
    %522 = vmatprep.subr.bf16.mxu0 %v459
    %523 = vmatpush1.bf16.msra.mxu0 %v458
    %524 = vmatprep.subr.bf16.mxu0 %v463
    %525 = vmatpush1.bf16.msra.mxu0 %v462
    %526 = vmatprep.subr.bf16.mxu0 %v467
    %527 = vmatpush1.bf16.msra.mxu0 %v466
    %528 = vmatprep.subr.bf16.mxu0 %v471
    %529 = vmatpush1.bf16.msra.mxu0 %v470
    %530 = vmatprep.subr.bf16.mxu0 %v475
    %531 = vmatpush1.bf16.msra.mxu0 %v474
    %532 = vmatprep.subr.bf16.mxu0 %v479
    %533 = vmatpush1.bf16.msra.mxu0 %v478
    %534 = vmatprep.subr.bf16.mxu0 %v483
    %535 = vmatpush1.bf16.msra.mxu0 %v482
    %536 = vmatprep.subr.bf16.mxu0 %v487
    %537 = vmatpush1.bf16.msra.mxu0 %v486
    %538 = vmatprep.subr.bf16.mxu0 0
    %539 = vmatpush1.bf16.msra.mxu0 0
    %540 = vmatprep.subr.bf16.mxu0 0
    %541 = vmatpush1.bf16.msra.mxu0 0
    %542 = vmatprep.subr.bf16.mxu0 0
    %543 = vmatpush1.bf16.msra.mxu0 0
    %544 = vmatprep.subr.bf16.mxu0 0
    %545 = vmatpush1.bf16.msra.mxu0 0
    %546 = vmatprep.subr.bf16.mxu0 0
    %547 = vmatpush1.bf16.msra.mxu0 0
    %548 = vmatprep.subr.bf16.mxu0 0
    %549 = vmatpush1.bf16.msra.mxu0 0
    %550 = vmatprep.subr.bf16.mxu0 0
    %551 = vmatpush1.bf16.msra.mxu0 0
    %552 = vmatprep.subr.bf16.mxu0 0
    %553 = vmatpush1.bf16.msra.mxu0 0
    %554 = vmatprep.mubr.bf16.mxu0 0
    %555 = vmatmul.mubr.bf16.gmra.mrb[0].mxu0 0
    %v556 = vpop.f32.mrb[0].mxu0
    %v557 = vadd.f32 0.0, %v556
    %v558 = vpop.f32.mrb[0].mxu0
    %v559 = vadd.f32 0.0, %v558
    %v560 = vpop.f32.mrb[0].mxu0
    %v561 = vpop.f32.mrb[0].mxu0
    %562 = vdwg.mxu0
    %563 = vmatprep.subr.bf16.mxu0 %v461
    %564 = vmatpush1.bf16.msra.mxu0 %v460
    %565 = vmatprep.subr.bf16.mxu0 %v465
    %566 = vmatpush1.bf16.msra.mxu0 %v464
    %567 = vmatprep.subr.bf16.mxu0 %v469
    %568 = vmatpush1.bf16.msra.mxu0 %v468
    %569 = vmatprep.subr.bf16.mxu0 %v473
    %570 = vmatpush1.bf16.msra.mxu0 %v472
    %571 = vmatprep.subr.bf16.mxu0 %v477
    %572 = vmatpush1.bf16.msra.mxu0 %v476
    %573 = vmatprep.subr.bf16.mxu0 %v481
    %574 = vmatpush1.bf16.msra.mxu0 %v480
    %575 = vmatprep.subr.bf16.mxu0 %v485
    %576 = vmatpush1.bf16.msra.mxu0 %v484
    %577 = vmatprep.subr.bf16.mxu0 %v489
    %578 = vmatpush1.bf16.msra.mxu0 %v488
    %579 = vmatprep.subr.bf16.mxu0 0
    %580 = vmatpush1.bf16.msra.mxu0 0
    %581 = vmatprep.subr.bf16.mxu0 0
    %582 = vmatpush1.bf16.msra.mxu0 0
    %583 = vmatprep.subr.bf16.mxu0 0
    %584 = vmatpush1.bf16.msra.mxu0 0
    %585 = vmatprep.subr.bf16.mxu0 0
    %586 = vmatpush1.bf16.msra.mxu0 0
    %587 = vmatprep.subr.bf16.mxu0 0
    %588 = vmatpush1.bf16.msra.mxu0 0
    %589 = vmatprep.subr.bf16.mxu0 0
    %590 = vmatpush1.bf16.msra.mxu0 0
    %591 = vmatprep.subr.bf16.mxu0 0
    %592 = vmatpush1.bf16.msra.mxu0 0
    %593 = vmatprep.subr.bf16.mxu0 0
    %594 = vmatpush1.bf16.msra.mxu0 0
    %595 = vmatprep.mubr.bf16.mxu0 0
    %596 = vmatmul.mubr.bf16.gmra.mrb[0].mxu0 0
    %v597 = vpop.f32.mrb[0].mxu0
    %v598 = vadd.f32 0.0, %v597
    %v599 = vpop.f32.mrb[0].mxu0
    %v600 = vadd.f32 0.0, %v599
    %v601 = vpop.f32.mrb[0].mxu0
    %v602 = vpop.f32.mrb[0].mxu0
    %603 = vdwg.mxu0
    %v604 = vadd.f32 %v326, %v557
    %v605 = vadd.f32 %v327, %v559
    %v606 = vadd.f32 %v328, %v598
    %v607 = vadd.f32 %v329, %v600
    %v608 = vmul.f32 %v604, 0.5
    %v609 = vmul.f32 %v605, 0.5
    %v610 = vmul.f32 %v606, 0.5
    %v611 = vtanh.pop %v608
    %v612 = vtanh.pop %v609
    %v613 = vtanh.pop %v610
    %v614 = vmul.f32 %v611, 0.5
    %v615 = vmul.f32 %v612, 0.5
    %v616 = vmul.f32 %v613, 0.5
    %v617 = vadd.f32 %v614, 0.5
    %v618 = vadd.f32 %v615, 0.5
    %v619 = vadd.f32 %v616, 0.5
    %v620 = vtanh.pop %v607
    %v621 = vmul.f32 %v618, 0.0
    %v622 = vmul.f32 %v617, %v620
    %v623 = vadd.f32 %v621, %v622
    %v624 = vtanh.pop %v623
    %v625 = vmul.f32 %v619, %v624
    %v626 = vld [vmem:[#allocation2 + $0x20] sm:$0xff]
    %v627 = vld [vmem:[#allocation2 + $0x28] sm:$0xff]
    %v628 = vld [vmem:[#allocation2 + $0x30] sm:$0xff]
    %v629 = vld [vmem:[#allocation2 + $0x38] sm:$0xff]
    %v630 = vpack.c.bf16 %v625, %v625
    %631 = vmatprep.subr.bf16.mxu0 %v459
    %632 = vmatpush1.bf16.msra.mxu0 %v458
    %633 = vmatprep.subr.bf16.mxu0 %v463
    %634 = vmatpush1.bf16.msra.mxu0 %v462
    %635 = vmatprep.subr.bf16.mxu0 %v467
    %636 = vmatpush1.bf16.msra.mxu0 %v466
    %637 = vmatprep.subr.bf16.mxu0 %v471
    %638 = vmatpush1.bf16.msra.mxu0 %v470
    %639 = vmatprep.subr.bf16.mxu0 %v475
    %640 = vmatpush1.bf16.msra.mxu0 %v474
    %641 = vmatprep.subr.bf16.mxu0 %v479
    %642 = vmatpush1.bf16.msra.mxu0 %v478
    %643 = vmatprep.subr.bf16.mxu0 %v483
    %644 = vmatpush1.bf16.msra.mxu0 %v482
    %645 = vmatprep.subr.bf16.mxu0 %v487
    %646 = vmatpush1.bf16.msra.mxu0 %v486
    %647 = vmatprep.subr.bf16.mxu0 0
    %648 = vmatpush1.bf16.msra.mxu0 0
    %649 = vmatprep.subr.bf16.mxu0 0
    %650 = vmatpush1.bf16.msra.mxu0 0
    %651 = vmatprep.subr.bf16.mxu0 0
    %652 = vmatpush1.bf16.msra.mxu0 0
    %653 = vmatprep.subr.bf16.mxu0 0
    %654 = vmatpush1.bf16.msra.mxu0 0
    %655 = vmatprep.subr.bf16.mxu0 0
    %656 = vmatpush1.bf16.msra.mxu0 0
    %657 = vmatprep.subr.bf16.mxu0 0
    %658 = vmatpush1.bf16.msra.mxu0 0
    %659 = vmatprep.subr.bf16.mxu0 0
    %660 = vmatpush1.bf16.msra.mxu0 0
    %661 = vmatprep.subr.bf16.mxu0 0
    %662 = vmatpush1.bf16.msra.mxu0 0
    %663 = vmatprep.mubr.bf16.mxu0 0
    %664 = vmatmul.mubr.bf16.gmra.mrb[0].mxu0 %v630
    %v665 = vpop.f32.mrb[0].mxu0
    %v666 = vadd.f32 0.0, %v665
    %v667 = vpop.f32.mrb[0].mxu0
    %v668 = vadd.f32 0.0, %v667
    %v669 = vpop.f32.mrb[0].mxu0
    %v670 = vpop.f32.mrb[0].mxu0
    %671 = vdwg.mxu0
    %672 = vmatprep.subr.bf16.mxu0 %v461
    %673 = vmatpush1.bf16.msra.mxu0 %v460
    %674 = vmatprep.subr.bf16.mxu0 %v465
    %675 = vmatpush1.bf16.msra.mxu0 %v464
    %676 = vmatprep.subr.bf16.mxu0 %v469
    %677 = vmatpush1.bf16.msra.mxu0 %v468
    %678 = vmatprep.subr.bf16.mxu0 %v473
    %679 = vmatpush1.bf16.msra.mxu0 %v472
    %680 = vmatprep.subr.bf16.mxu0 %v477
    %681 = vmatpush1.bf16.msra.mxu0 %v476
    %682 = vmatprep.subr.bf16.mxu0 %v481
    %683 = vmatpush1.bf16.msra.mxu0 %v480
    %684 = vmatprep.subr.bf16.mxu0 %v485
    %685 = vmatpush1.bf16.msra.mxu0 %v484
    %686 = vmatprep.subr.bf16.mxu0 %v489
    %687 = vmatpush1.bf16.msra.mxu0 %v488
    %688 = vmatprep.subr.bf16.mxu0 0
    %689 = vmatpush1.bf16.msra.mxu0 0
    %690 = vmatprep.subr.bf16.mxu0 0
    %691 = vmatpush1.bf16.msra.mxu0 0
    %692 = vmatprep.subr.bf16.mxu0 0
    %693 = vmatpush1.bf16.msra.mxu0 0
    %694 = vmatprep.subr.bf16.mxu0 0
    %695 = vmatpush1.bf16.msra.mxu0 0
    %696 = vmatprep.subr.bf16.mxu0 0
    %697 = vmatpush1.bf16.msra.mxu0 0
    %698 = vmatprep.subr.bf16.mxu0 0
    %699 = vmatpush1.bf16.msra.mxu0 0
    %700 = vmatprep.subr.bf16.mxu0 0
    %701 = vmatpush1.bf16.msra.mxu0 0
    %702 = vmatprep.subr.bf16.mxu0 0
    %703 = vmatpush1.bf16.msra.mxu0 0
    %704 = vmatprep.mubr.bf16.mxu0 0
    %705 = vmatmul.mubr.bf16.gmra.mrb[0].mxu0 %v630
    %v706 = vpop.f32.mrb[0].mxu0
    %v707 = vadd.f32 0.0, %v706
    %v708 = vpop.f32.mrb[0].mxu0
    %v709 = vadd.f32 0.0, %v708
    %v710 = vpop.f32.mrb[0].mxu0
    %v711 = vpop.f32.mrb[0].mxu0
    %712 = vdwg.mxu0
    %v713 = vadd.f32 %v626, %v666
    %v714 = vadd.f32 %v627, %v668
    %v715 = vadd.f32 %v628, %v707
    %v716 = vadd.f32 %v629, %v709
    %v717 = vmul.f32 %v713, 0.5
    %v718 = vmul.f32 %v714, 0.5
    %v719 = vmul.f32 %v715, 0.5
    %v720 = vtanh.pop %v717
    %v721 = vtanh.pop %v718
    %v722 = vtanh.pop %v719
    %v723 = vmul.f32 %v720, 0.5
    %v724 = vmul.f32 %v721, 0.5
    %v725 = vmul.f32 %v722, 0.5
    %v726 = vadd.f32 %v723, 0.5
    %v727 = vadd.f32 %v724, 0.5
    %v728 = vadd.f32 %v725, 0.5
    %v729 = vtanh.pop %v716
    %v730 = vmul.f32 %v727, %v623
    %v731 = vmul.f32 %v726, %v729
    %v732 = vadd.f32 %v730, %v731
    %v733 = vtanh.pop %v732
    %v734 = vmul.f32 %v728, %v733
    %v735 = vld [vmem:[#allocation2 + $0x40] sm:$0xff]
    %v736 = vld [vmem:[#allocation2 + $0x48] sm:$0xff]
    %v737 = vld [vmem:[#allocation2 + $0x50] sm:$0xff]
    %v738 = vld [vmem:[#allocation2 + $0x58] sm:$0xff]
    %v739 = vpack.c.bf16 %v734, %v734
    %740 = vmatprep.subr.bf16.mxu0 %v459
    %741 = vmatpush1.bf16.msra.mxu0 %v458
    %742 = vmatprep.subr.bf16.mxu0 %v463
    %743 = vmatpush1.bf16.msra.mxu0 %v462
    %744 = vmatprep.subr.bf16.mxu0 %v467
    %745 = vmatpush1.bf16.msra.mxu0 %v466
    %746 = vmatprep.subr.bf16.mxu0 %v471
    %747 = vmatpush1.bf16.msra.mxu0 %v470
    %748 = vmatprep.subr.bf16.mxu0 %v475
    %749 = vmatpush1.bf16.msra.mxu0 %v474
    %750 = vmatprep.subr.bf16.mxu0 %v479
    %751 = vmatpush1.bf16.msra.mxu0 %v478
    %752 = vmatprep.subr.bf16.mxu0 %v483
    %753 = vmatpush1.bf16.msra.mxu0 %v482
    %754 = vmatprep.subr.bf16.mxu0 %v487
    %755 = vmatpush1.bf16.msra.mxu0 %v486
    %756 = vmatprep.subr.bf16.mxu0 0
    %757 = vmatpush1.bf16.msra.mxu0 0
    %758 = vmatprep.subr.bf16.mxu0 0
    %759 = vmatpush1.bf16.msra.mxu0 0
    %760 = vmatprep.subr.bf16.mxu0 0
    %761 = vmatpush1.bf16.msra.mxu0 0
    %762 = vmatprep.subr.bf16.mxu0 0
    %763 = vmatpush1.bf16.msra.mxu0 0
    %764 = vmatprep.subr.bf16.mxu0 0
    %765 = vmatpush1.bf16.msra.mxu0 0
    %766 = vmatprep.subr.bf16.mxu0 0
    %767 = vmatpush1.bf16.msra.mxu0 0
    %768 = vmatprep.subr.bf16.mxu0 0
    %769 = vmatpush1.bf16.msra.mxu0 0
    %770 = vmatprep.subr.bf16.mxu0 0
    %771 = vmatpush1.bf16.msra.mxu0 0
    %772 = vmatprep.mubr.bf16.mxu0 0
    %773 = vmatmul.mubr.bf16.gmra.mrb[0].mxu0 %v739
    %v774 = vpop.f32.mrb[0].mxu0
    %v775 = vadd.f32 0.0, %v774
    %v776 = vpop.f32.mrb[0].mxu0
    %v777 = vadd.f32 0.0, %v776
    %v778 = vpop.f32.mrb[0].mxu0
    %v779 = vpop.f32.mrb[0].mxu0
    %780 = vdwg.mxu0
    %781 = vmatprep.subr.bf16.mxu0 %v461
    %782 = vmatpush1.bf16.msra.mxu0 %v460
    %783 = vmatprep.subr.bf16.mxu0 %v465
    %784 = vmatpush1.bf16.msra.mxu0 %v464
    %785 = vmatprep.subr.bf16.mxu0 %v469
    %786 = vmatpush1.bf16.msra.mxu0 %v468
    %787 = vmatprep.subr.bf16.mxu0 %v473
    %788 = vmatpush1.bf16.msra.mxu0 %v472
    %789 = vmatprep.subr.bf16.mxu0 %v477
    %790 = vmatpush1.bf16.msra.mxu0 %v476
    %791 = vmatprep.subr.bf16.mxu0 %v481
    %792 = vmatpush1.bf16.msra.mxu0 %v480
    %793 = vmatprep.subr.bf16.mxu0 %v485
    %794 = vmatpush1.bf16.msra.mxu0 %v484
    %795 = vmatprep.subr.bf16.mxu0 %v489
    %796 = vmatpush1.bf16.msra.mxu0 %v488
    %797 = vmatprep.subr.bf16.mxu0 0
    %798 = vmatpush1.bf16.msra.mxu0 0
    %799 = vmatprep.subr.bf16.mxu0 0
    %800 = vmatpush1.bf16.msra.mxu0 0
    %801 = vmatprep.subr.bf16.mxu0 0
    %802 = vmatpush1.bf16.msra.mxu0 0
    %803 = vmatprep.subr.bf16.mxu0 0
    %804 = vmatpush1.bf16.msra.mxu0 0
    %805 = vmatprep.subr.bf16.mxu0 0
    %806 = vmatpush1.bf16.msra.mxu0 0
    %807 = vmatprep.subr.bf16.mxu0 0
    %808 = vmatpush1.bf16.msra.mxu0 0
    %809 = vmatprep.subr.bf16.mxu0 0
    %810 = vmatpush1.bf16.msra.mxu0 0
    %811 = vmatprep.subr.bf16.mxu0 0
    %812 = vmatpush1.bf16.msra.mxu0 0
    %813 = vmatprep.mubr.bf16.mxu0 0
    %814 = vmatmul.mubr.bf16.gmra.mrb[0].mxu0 %v739
    %v815 = vpop.f32.mrb[0].mxu0
    %v816 = vadd.f32 0.0, %v815
    %v817 = vpop.f32.mrb[0].mxu0
    %v818 = vadd.f32 0.0, %v817
    %v819 = vpop.f32.mrb[0].mxu0
    %v820 = vpop.f32.mrb[0].mxu0
    %821 = vdwg.mxu0
    %v822 = vadd.f32 %v735, %v775
    %v823 = vadd.f32 %v736, %v777
    %v824 = vadd.f32 %v737, %v816
    %v825 = vadd.f32 %v738, %v818
    %v826 = vmul.f32 %v822, 0.5
    %v827 = vmul.f32 %v823, 0.5
    %v828 = vmul.f32 %v824, 0.5
    %v829 = vtanh.pop %v826
    %v830 = vtanh.pop %v827
    %v831 = vtanh.pop %v828
    %v832 = vmul.f32 %v829, 0.5
    %v833 = vmul.f32 %v830, 0.5
    %v834 = vmul.f32 %v831, 0.5
    %v835 = vadd.f32 %v832, 0.5
    %v836 = vadd.f32 %v833, 0.5
    %v837 = vadd.f32 %v834, 0.5
    %v838 = vtanh.pop %v825
    %v839 = vmul.f32 %v836, %v732
    %v840 = vmul.f32 %v835, %v838
    %v841 = vadd.f32 %v839, %v840
    %v842 = vtanh.pop %v841
    %v843 = vmul.f32 %v837, %v842
    %v844 = vld [vmem:[#allocation2 + $0x60] sm:$0xff]
    %v845 = vld [vmem:[#allocation2 + $0x68] sm:$0xff]
    %v846 = vld [vmem:[#allocation2 + $0x70] sm:$0xff]
    %v847 = vld [vmem:[#allocation2 + $0x78] sm:$0xff]
    %v848 = vpack.c.bf16 %v843, %v843
    %849 = vmatprep.subr.bf16.mxu0 %v459
    %850 = vmatpush1.bf16.msra.mxu0 %v458
    %851 = vmatprep.subr.bf16.mxu0 %v463
    %852 = vmatpush1.bf16.msra.mxu0 %v462
    %853 = vmatprep.subr.bf16.mxu0 %v467
    %854 = vmatpush1.bf16.msra.mxu0 %v466
    %855 = vmatprep.subr.bf16.mxu0 %v471
    %856 = vmatpush1.bf16.msra.mxu0 %v470
    %857 = vmatprep.subr.bf16.mxu0 %v475
    %858 = vmatpush1.bf16.msra.mxu0 %v474
    %859 = vmatprep.subr.bf16.mxu0 %v479
    %860 = vmatpush1.bf16.msra.mxu0 %v478
    %861 = vmatprep.subr.bf16.mxu0 %v483
    %862 = vmatpush1.bf16.msra.mxu0 %v482
    %863 = vmatprep.subr.bf16.mxu0 %v487
    %864 = vmatpush1.bf16.msra.mxu0 %v486
    %865 = vmatprep.subr.bf16.mxu0 0
    %866 = vmatpush1.bf16.msra.mxu0 0
    %867 = vmatprep.subr.bf16.mxu0 0
    %868 = vmatpush1.bf16.msra.mxu0 0
    %869 = vmatprep.subr.bf16.mxu0 0
    %870 = vmatpush1.bf16.msra.mxu0 0
    %871 = vmatprep.subr.bf16.mxu0 0
    %872 = vmatpush1.bf16.msra.mxu0 0
    %873 = vmatprep.subr.bf16.mxu0 0
    %874 = vmatpush1.bf16.msra.mxu0 0
    %875 = vmatprep.subr.bf16.mxu0 0
    %876 = vmatpush1.bf16.msra.mxu0 0
    %877 = vmatprep.subr.bf16.mxu0 0
    %878 = vmatpush1.bf16.msra.mxu0 0
    %879 = vmatprep.subr.bf16.mxu0 0
    %880 = vmatpush1.bf16.msra.mxu0 0
    %881 = vmatprep.mubr.bf16.mxu0 0
    %882 = vmatmul.mubr.bf16.gmra.mrb[0].mxu0 %v848
    %v883 = vpop.f32.mrb[0].mxu0
    %v884 = vadd.f32 0.0, %v883
    %v885 = vpop.f32.mrb[0].mxu0
    %v886 = vadd.f32 0.0, %v885
    %v887 = vpop.f32.mrb[0].mxu0
    %v888 = vpop.f32.mrb[0].mxu0
    %889 = vdwg.mxu0
    %890 = vmatprep.subr.bf16.mxu0 %v461
    %891 = vmatpush1.bf16.msra.mxu0 %v460
    %892 = vmatprep.subr.bf16.mxu0 %v465
    %893 = vmatpush1.bf16.msra.mxu0 %v464
    %894 = vmatprep.subr.bf16.mxu0 %v469
    %895 = vmatpush1.bf16.msra.mxu0 %v468
    %896 = vmatprep.subr.bf16.mxu0 %v473
    %897 = vmatpush1.bf16.msra.mxu0 %v472
    %898 = vmatprep.subr.bf16.mxu0 %v477
    %899 = vmatpush1.bf16.msra.mxu0 %v476
    %900 = vmatprep.subr.bf16.mxu0 %v481
    %901 = vmatpush1.bf16.msra.mxu0 %v480
    %902 = vmatprep.subr.bf16.mxu0 %v485
    %903 = vmatpush1.bf16.msra.mxu0 %v484
    %904 = vmatprep.subr.bf16.mxu0 %v489
    %905 = vmatpush1.bf16.msra.mxu0 %v488
    %906 = vmatprep.subr.bf16.mxu0 0
    %907 = vmatpush1.bf16.msra.mxu0 0
    %908 = vmatprep.subr.bf16.mxu0 0
    %909 = vmatpush1.bf16.msra.mxu0 0
    %910 = vmatprep.subr.bf16.mxu0 0
    %911 = vmatpush1.bf16.msra.mxu0 0
    %912 = vmatprep.subr.bf16.mxu0 0
    %913 = vmatpush1.bf16.msra.mxu0 0
    %914 = vmatprep.subr.bf16.mxu0 0
    %915 = vmatpush1.bf16.msra.mxu0 0
    %916 = vmatprep.subr.bf16.mxu0 0
    %917 = vmatpush1.bf16.msra.mxu0 0
    %918 = vmatprep.subr.bf16.mxu0 0
    %919 = vmatpush1.bf16.msra.mxu0 0
    %920 = vmatprep.subr.bf16.mxu0 0
    %921 = vmatpush1.bf16.msra.mxu0 0
    %922 = vmatprep.mubr.bf16.mxu0 0
    %923 = vmatmul.mubr.bf16.gmra.mrb[0].mxu0 %v848
    %v924 = vpop.f32.mrb[0].mxu0
    %v925 = vadd.f32 0.0, %v924
    %v926 = vpop.f32.mrb[0].mxu0
    %v927 = vadd.f32 0.0, %v926
    %v928 = vpop.f32.mrb[0].mxu0
    %v929 = vpop.f32.mrb[0].mxu0
    %930 = vdwg.mxu0
    %v931 = vadd.f32 %v844, %v884
    %v932 = vadd.f32 %v845, %v886
    %v933 = vadd.f32 %v846, %v925
    %v934 = vadd.f32 %v847, %v927
    %v935 = vmul.f32 %v931, 0.5
    %v936 = vmul.f32 %v932, 0.5
    %v937 = vmul.f32 %v933, 0.5
    %v938 = vtanh.pop %v935
    %v939 = vtanh.pop %v936
    %v940 = vtanh.pop %v937
    %v941 = vmul.f32 %v938, 0.5
    %v942 = vmul.f32 %v939, 0.5
    %v943 = vmul.f32 %v940, 0.5
    %v944 = vadd.f32 %v941, 0.5
    %v945 = vadd.f32 %v942, 0.5
    %v946 = vadd.f32 %v943, 0.5
    %v947 = vtanh.pop %v934
    %v948 = vmul.f32 %v945, %v841
    %v949 = vmul.f32 %v944, %v947
    %v950 = vadd.f32 %v948, %v949
    %v951 = vtanh.pop %v950
    %v952 = vmul.f32 %v946, %v951
    %v953 = vld [vmem:[#allocation2 + $0x80] sm:$0xff]
    %v954 = vld [vmem:[#allocation2 + $0x88] sm:$0xff]
    %v955 = vld [vmem:[#allocation2 + $0x90] sm:$0xff]
    %v956 = vld [vmem:[#allocation2 + $0x98] sm:$0xff]
    %v957 = vpack.c.bf16 %v952, %v952
    %958 = vmatprep.subr.bf16.mxu0 %v459
    %959 = vmatpush1.bf16.msra.mxu0 %v458
    %960 = vmatprep.subr.bf16.mxu0 %v463
    %961 = vmatpush1.bf16.msra.mxu0 %v462
    %962 = vmatprep.subr.bf16.mxu0 %v467
    %963 = vmatpush1.bf16.msra.mxu0 %v466
    %964 = vmatprep.subr.bf16.mxu0 %v471
    %965 = vmatpush1.bf16.msra.mxu0 %v470
    %966 = vmatprep.subr.bf16.mxu0 %v475
    %967 = vmatpush1.bf16.msra.mxu0 %v474
    %968 = vmatprep.subr.bf16.mxu0 %v479
    %969 = vmatpush1.bf16.msra.mxu0 %v478
    %970 = vmatprep.subr.bf16.mxu0 %v483
    %971 = vmatpush1.bf16.msra.mxu0 %v482
    %972 = vmatprep.subr.bf16.mxu0 %v487
    %973 = vmatpush1.bf16.msra.mxu0 %v486
    %974 = vmatprep.subr.bf16.mxu0 0
    %975 = vmatpush1.bf16.msra.mxu0 0
    %976 = vmatprep.subr.bf16.mxu0 0
    %977 = vmatpush1.bf16.msra.mxu0 0
    %978 = vmatprep.subr.bf16.mxu0 0
    %979 = vmatpush1.bf16.msra.mxu0 0
    %980 = vmatprep.subr.bf16.mxu0 0
    %981 = vmatpush1.bf16.msra.mxu0 0
    %982 = vmatprep.subr.bf16.mxu0 0
    %983 = vmatpush1.bf16.msra.mxu0 0
    %984 = vmatprep.subr.bf16.mxu0 0
    %985 = vmatpush1.bf16.msra.mxu0 0
    %986 = vmatprep.subr.bf16.mxu0 0
    %987 = vmatpush1.bf16.msra.mxu0 0
    %988 = vmatprep.subr.bf16.mxu0 0
    %989 = vmatpush1.bf16.msra.mxu0 0
    %990 = vmatprep.mubr.bf16.mxu0 0
    %991 = vmatmul.mubr.bf16.gmra.mrb[0].mxu0 %v957
    %v992 = vpop.f32.mrb[0].mxu0
    %v993 = vadd.f32 0.0, %v992
    %v994 = vpop.f32.mrb[0].mxu0
    %v995 = vadd.f32 0.0, %v994
    %v996 = vpop.f32.mrb[0].mxu0
    %v997 = vpop.f32.mrb[0].mxu0
    %998 = vdwg.mxu0
    %999 = vmatprep.subr.bf16.mxu0 %v461
    %1000 = vmatpush1.bf16.msra.mxu0 %v460
    %1001 = vmatprep.subr.bf16.mxu0 %v465
    %1002 = vmatpush1.bf16.msra.mxu0 %v464
    %1003 = vmatprep.subr.bf16.mxu0 %v469
    %1004 = vmatpush1.bf16.msra.mxu0 %v468
    %1005 = vmatprep.subr.bf16.mxu0 %v473
    %1006 = vmatpush1.bf16.msra.mxu0 %v472
    %1007 = vmatprep.subr.bf16.mxu0 %v477
    %1008 = vmatpush1.bf16.msra.mxu0 %v476
    %1009 = vmatprep.subr.bf16.mxu0 %v481
    %1010 = vmatpush1.bf16.msra.mxu0 %v480
    %1011 = vmatprep.subr.bf16.mxu0 %v485
    %1012 = vmatpush1.bf16.msra.mxu0 %v484
    %1013 = vmatprep.subr.bf16.mxu0 %v489
    %1014 = vmatpush1.bf16.msra.mxu0 %v488
    %1015 = vmatprep.subr.bf16.mxu0 0
    %1016 = vmatpush1.bf16.msra.mxu0 0
    %1017 = vmatprep.subr.bf16.mxu0 0
    %1018 = vmatpush1.bf16.msra.mxu0 0
    %1019 = vmatprep.subr.bf16.mxu0 0
    %1020 = vmatpush1.bf16.msra.mxu0 0
    %1021 = vmatprep.subr.bf16.mxu0 0
    %1022 = vmatpush1.bf16.msra.mxu0 0
    %1023 = vmatprep.subr.bf16.mxu0 0
    %1024 = vmatpush1.bf16.msra.mxu0 0
    %1025 = vmatprep.subr.bf16.mxu0 0
    %1026 = vmatpush1.bf16.msra.mxu0 0
    %1027 = vmatprep.subr.bf16.mxu0 0
    %1028 = vmatpush1.bf16.msra.mxu0 0
    %1029 = vmatprep.subr.bf16.mxu0 0
    %1030 = vmatpush1.bf16.msra.mxu0 0
    %1031 = vmatprep.mubr.bf16.mxu0 0
    %1032 = vmatmul.mubr.bf16.gmra.mrb[0].mxu0 %v957
    %v1033 = vpop.f32.mrb[0].mxu0
    %v1034 = vadd.f32 0.0, %v1033
    %v1035 = vpop.f32.mrb[0].mxu0
    %v1036 = vadd.f32 0.0, %v1035
    %v1037 = vpop.f32.mrb[0].mxu0
    %v1038 = vpop.f32.mrb[0].mxu0
    %1039 = vdwg.mxu0
    %v1040 = vadd.f32 %v953, %v993
    %v1041 = vadd.f32 %v954, %v995
    %v1042 = vadd.f32 %v955, %v1034
    %v1043 = vadd.f32 %v956, %v1036
    %v1044 = vmul.f32 %v1040, 0.5
    %v1045 = vmul.f32 %v1041, 0.5
    %v1046 = vmul.f32 %v1042, 0.5
    %v1047 = vtanh.pop %v1044
    %v1048 = vtanh.pop %v1045
    %v1049 = vtanh.pop %v1046
    %v1050 = vmul.f32 %v1047, 0.5
    %v1051 = vmul.f32 %v1048, 0.5
    %v1052 = vmul.f32 %v1049, 0.5
    %v1053 = vadd.f32 %v1050, 0.5
    %v1054 = vadd.f32 %v1051, 0.5
    %v1055 = vadd.f32 %v1052, 0.5
    %v1056 = vtanh.pop %v1043
    %v1057 = vmul.f32 %v1054, %v950
    %v1058 = vmul.f32 %v1053, %v1056
    %v1059 = vadd.f32 %v1057, %v1058
    %v1060 = vtanh.pop %v1059
    %v1061 = vmul.f32 %v1055, %v1060
    %v1062 = vld [vmem:[#allocation2 + $0xa0] sm:$0xff]
    %v1063 = vld [vmem:[#allocation2 + $0xa8] sm:$0xff]
    %v1064 = vld [vmem:[#allocation2 + $0xb0] sm:$0xff]
    %v1065 = vld [vmem:[#allocation2 + $0xb8] sm:$0xff]
    %v1066 = vpack.c.bf16 %v1061, %v1061
    %1067 = vmatprep.subr.bf16.mxu0 %v459
    %1068 = vmatpush1.bf16.msra.mxu0 %v458
    %1069 = vmatprep.subr.bf16.mxu0 %v463
    %1070 = vmatpush1.bf16.msra.mxu0 %v462
    %1071 = vmatprep.subr.bf16.mxu0 %v467
    %1072 = vmatpush1.bf16.msra.mxu0 %v466
    %1073 = vmatprep.subr.bf16.mxu0 %v471
    %1074 = vmatpush1.bf16.msra.mxu0 %v470
    %1075 = vmatprep.subr.bf16.mxu0 %v475
    %1076 = vmatpush1.bf16.msra.mxu0 %v474
    %1077 = vmatprep.subr.bf16.mxu0 %v479
    %1078 = vmatpush1.bf16.msra.mxu0 %v478
    %1079 = vmatprep.subr.bf16.mxu0 %v483
    %1080 = vmatpush1.bf16.msra.mxu0 %v482
    %1081 = vmatprep.subr.bf16.mxu0 %v487
    %1082 = vmatpush1.bf16.msra.mxu0 %v486
    %1083 = vmatprep.subr.bf16.mxu0 0
    %1084 = vmatpush1.bf16.msra.mxu0 0
    %1085 = vmatprep.subr.bf16.mxu0 0
    %1086 = vmatpush1.bf16.msra.mxu0 0
    %1087 = vmatprep.subr.bf16.mxu0 0
    %1088 = vmatpush1.bf16.msra.mxu0 0
    %1089 = vmatprep.subr.bf16.mxu0 0
    %1090 = vmatpush1.bf16.msra.mxu0 0
    %1091 = vmatprep.subr.bf16.mxu0 0
    %1092 = vmatpush1.bf16.msra.mxu0 0
    %1093 = vmatprep.subr.bf16.mxu0 0
    %1094 = vmatpush1.bf16.msra.mxu0 0
    %1095 = vmatprep.subr.bf16.mxu0 0
    %1096 = vmatpush1.bf16.msra.mxu0 0
    %1097 = vmatprep.subr.bf16.mxu0 0
    %1098 = vmatpush1.bf16.msra.mxu0 0
    %1099 = vmatprep.mubr.bf16.mxu0 0
    %1100 = vmatmul.mubr.bf16.gmra.mrb[0].mxu0 %v1066
    %v1101 = vpop.f32.mrb[0].mxu0
    %v1102 = vadd.f32 0.0, %v1101
    %v1103 = vpop.f32.mrb[0].mxu0
    %v1104 = vadd.f32 0.0, %v1103
    %v1105 = vpop.f32.mrb[0].mxu0
    %v1106 = vpop.f32.mrb[0].mxu0
    %1107 = vdwg.mxu0
    %1108 = vmatprep.subr.bf16.mxu0 %v461
    %1109 = vmatpush1.bf16.msra.mxu0 %v460
    %1110 = vmatprep.subr.bf16.mxu0 %v465
    %1111 = vmatpush1.bf16.msra.mxu0 %v464
    %1112 = vmatprep.subr.bf16.mxu0 %v469
    %1113 = vmatpush1.bf16.msra.mxu0 %v468
    %1114 = vmatprep.subr.bf16.mxu0 %v473
    %1115 = vmatpush1.bf16.msra.mxu0 %v472
    %1116 = vmatprep.subr.bf16.mxu0 %v477
    %1117 = vmatpush1.bf16.msra.mxu0 %v476
    %1118 = vmatprep.subr.bf16.mxu0 %v481
    %1119 = vmatpush1.bf16.msra.mxu0 %v480
    %1120 = vmatprep.subr.bf16.mxu0 %v485
    %1121 = vmatpush1.bf16.msra.mxu0 %v484
    %1122 = vmatprep.subr.bf16.mxu0 %v489
    %1123 = vmatpush1.bf16.msra.mxu0 %v488
    %1124 = vmatprep.subr.bf16.mxu0 0
    %1125 = vmatpush1.bf16.msra.mxu0 0
    %1126 = vmatprep.subr.bf16.mxu0 0
    %1127 = vmatpush1.bf16.msra.mxu0 0
    %1128 = vmatprep.subr.bf16.mxu0 0
    %1129 = vmatpush1.bf16.msra.mxu0 0
    %1130 = vmatprep.subr.bf16.mxu0 0
    %1131 = vmatpush1.bf16.msra.mxu0 0
    %1132 = vmatprep.subr.bf16.mxu0 0
    %1133 = vmatpush1.bf16.msra.mxu0 0
    %1134 = vmatprep.subr.bf16.mxu0 0
    %1135 = vmatpush1.bf16.msra.mxu0 0
    %1136 = vmatprep.subr.bf16.mxu0 0
    %1137 = vmatpush1.bf16.msra.mxu0 0
    %1138 = vmatprep.subr.bf16.mxu0 0
    %1139 = vmatpush1.bf16.msra.mxu0 0
    %1140 = vmatprep.mubr.bf16.mxu0 0
    %1141 = vmatmul.mubr.bf16.gmra.mrb[0].mxu0 %v1066
    %v1142 = vpop.f32.mrb[0].mxu0
    %v1143 = vadd.f32 0.0, %v1142
    %v1144 = vpop.f32.mrb[0].mxu0
    %v1145 = vadd.f32 0.0, %v1144
    %v1146 = vpop.f32.mrb[0].mxu0
    %v1147 = vpop.f32.mrb[0].mxu0
    %1148 = vdwg.mxu0
    %v1149 = vadd.f32 %v1062, %v1102
    %v1150 = vadd.f32 %v1063, %v1104
    %v1151 = vadd.f32 %v1064, %v1143
    %v1152 = vadd.f32 %v1065, %v1145
    %v1153 = vmul.f32 %v1149, 0.5
    %v1154 = vmul.f32 %v1150, 0.5
    %v1155 = vmul.f32 %v1151, 0.5
    %v1156 = vtanh.pop %v1153
    %v1157 = vtanh.pop %v1154
    %v1158 = vtanh.pop %v1155
    %v1159 = vmul.f32 %v1156, 0.5
    %v1160 = vmul.f32 %v1157, 0.5
    %v1161 = vmul.f32 %v1158, 0.5
    %v1162 = vadd.f32 %v1159, 0.5
    %v1163 = vadd.f32 %v1160, 0.5
    %v1164 = vadd.f32 %v1161, 0.5
    %v1165 = vtanh.pop %v1152
    %v1166 = vmul.f32 %v1163, %v1059
    %v1167 = vmul.f32 %v1162, %v1165
    %v1168 = vadd.f32 %v1166, %v1167
    %v1169 = vtanh.pop %v1168
    %v1170 = vmul.f32 %v1164, %v1169
    %v1171 = vld [vmem:[#allocation2 + $0xc0] sm:$0xff]
    %v1172 = vld [vmem:[#allocation2 + $0xc8] sm:$0xff]
    %v1173 = vld [vmem:[#allocation2 + $0xd0] sm:$0xff]
    %v1174 = vld [vmem:[#allocation2 + $0xd8] sm:$0xff]
    %v1175 = vpack.c.bf16 %v1170, %v1170
    %1176 = vmatprep.subr.bf16.mxu0 %v459
    %1177 = vmatpush1.bf16.msra.mxu0 %v458
    %1178 = vmatprep.subr.bf16.mxu0 %v463
    %1179 = vmatpush1.bf16.msra.mxu0 %v462
    %1180 = vmatprep.subr.bf16.mxu0 %v467
    %1181 = vmatpush1.bf16.msra.mxu0 %v466
    %1182 = vmatprep.subr.bf16.mxu0 %v471
    %1183 = vmatpush1.bf16.msra.mxu0 %v470
    %1184 = vmatprep.subr.bf16.mxu0 %v475
    %1185 = vmatpush1.bf16.msra.mxu0 %v474
    %1186 = vmatprep.subr.bf16.mxu0 %v479
    %1187 = vmatpush1.bf16.msra.mxu0 %v478
    %1188 = vmatprep.subr.bf16.mxu0 %v483
    %1189 = vmatpush1.bf16.msra.mxu0 %v482
    %1190 = vmatprep.subr.bf16.mxu0 %v487
    %1191 = vmatpush1.bf16.msra.mxu0 %v486
    %1192 = vmatprep.subr.bf16.mxu0 0
    %1193 = vmatpush1.bf16.msra.mxu0 0
    %1194 = vmatprep.subr.bf16.mxu0 0
    %1195 = vmatpush1.bf16.msra.mxu0 0
    %1196 = vmatprep.subr.bf16.mxu0 0
    %1197 = vmatpush1.bf16.msra.mxu0 0
    %1198 = vmatprep.subr.bf16.mxu0 0
    %1199 = vmatpush1.bf16.msra.mxu0 0
    %1200 = vmatprep.subr.bf16.mxu0 0
    %1201 = vmatpush1.bf16.msra.mxu0 0
    %1202 = vmatprep.subr.bf16.mxu0 0
    %1203 = vmatpush1.bf16.msra.mxu0 0
    %1204 = vmatprep.subr.bf16.mxu0 0
    %1205 = vmatpush1.bf16.msra.mxu0 0
    %1206 = vmatprep.subr.bf16.mxu0 0
    %1207 = vmatpush1.bf16.msra.mxu0 0
    %1208 = vmatprep.mubr.bf16.mxu0 0
    %1209 = vmatmul.mubr.bf16.gmra.mrb[0].mxu0 %v1175
    %v1210 = vpop.f32.mrb[0].mxu0
    %v1211 = vadd.f32 0.0, %v1210
    %v1212 = vpop.f32.mrb[0].mxu0
    %v1213 = vadd.f32 0.0, %v1212
    %v1214 = vpop.f32.mrb[0].mxu0
    %v1215 = vpop.f32.mrb[0].mxu0
    %1216 = vdwg.mxu0
    %1217 = vmatprep.subr.bf16.mxu0 %v461
    %1218 = vmatpush1.bf16.msra.mxu0 %v460
    %1219 = vmatprep.subr.bf16.mxu0 %v465
    %1220 = vmatpush1.bf16.msra.mxu0 %v464
    %1221 = vmatprep.subr.bf16.mxu0 %v469
    %1222 = vmatpush1.bf16.msra.mxu0 %v468
    %1223 = vmatprep.subr.bf16.mxu0 %v473
    %1224 = vmatpush1.bf16.msra.mxu0 %v472
    %1225 = vmatprep.subr.bf16.mxu0 %v477
    %1226 = vmatpush1.bf16.msra.mxu0 %v476
    %1227 = vmatprep.subr.bf16.mxu0 %v481
    %1228 = vmatpush1.bf16.msra.mxu0 %v480
    %1229 = vmatprep.subr.bf16.mxu0 %v485
    %1230 = vmatpush1.bf16.msra.mxu0 %v484
    %1231 = vmatprep.subr.bf16.mxu0 %v489
    %1232 = vmatpush1.bf16.msra.mxu0 %v488
    %1233 = vmatprep.subr.bf16.mxu0 0
    %1234 = vmatpush1.bf16.msra.mxu0 0
    %1235 = vmatprep.subr.bf16.mxu0 0
    %1236 = vmatpush1.bf16.msra.mxu0 0
    %1237 = vmatprep.subr.bf16.mxu0 0
    %1238 = vmatpush1.bf16.msra.mxu0 0
    %1239 = vmatprep.subr.bf16.mxu0 0
    %1240 = vmatpush1.bf16.msra.mxu0 0
    %1241 = vmatprep.subr.bf16.mxu0 0
    %1242 = vmatpush1.bf16.msra.mxu0 0
    %1243 = vmatprep.subr.bf16.mxu0 0
    %1244 = vmatpush1.bf16.msra.mxu0 0
    %1245 = vmatprep.subr.bf16.mxu0 0
    %1246 = vmatpush1.bf16.msra.mxu0 0
    %1247 = vmatprep.subr.bf16.mxu0 0
    %1248 = vmatpush1.bf16.msra.mxu0 0
    %1249 = vmatprep.mubr.bf16.mxu0 0
    %1250 = vmatmul.mubr.bf16.gmra.mrb[0].mxu0 %v1175
    %v1251 = vpop.f32.mrb[0].mxu0
    %v1252 = vadd.f32 0.0, %v1251
    %v1253 = vpop.f32.mrb[0].mxu0
    %v1254 = vadd.f32 0.0, %v1253
    %v1255 = vpop.f32.mrb[0].mxu0
    %v1256 = vpop.f32.mrb[0].mxu0
    %1257 = vdwg.mxu0
    %v1258 = vadd.f32 %v1171, %v1211
    %v1259 = vadd.f32 %v1172, %v1213
    %v1260 = vadd.f32 %v1173, %v1252
    %v1261 = vadd.f32 %v1174, %v1254
    %v1262 = vmul.f32 %v1258, 0.5
    %v1263 = vmul.f32 %v1259, 0.5
    %v1264 = vmul.f32 %v1260, 0.5
    %v1265 = vtanh.pop %v1262
    %v1266 = vtanh.pop %v1263
    %v1267 = vtanh.pop %v1264
    %v1268 = vmul.f32 %v1265, 0.5
    %v1269 = vmul.f32 %v1266, 0.5
    %v1270 = vmul.f32 %v1267, 0.5
    %v1271 = vadd.f32 %v1268, 0.5
    %v1272 = vadd.f32 %v1269, 0.5
    %v1273 = vadd.f32 %v1270, 0.5
    %v1274 = vtanh.pop %v1261
    %v1275 = vmul.f32 %v1272, %v1168
    %v1276 = vmul.f32 %v1271, %v1274
    %v1277 = vadd.f32 %v1275, %v1276
    %v1278 = vtanh.pop %v1277
    %v1279 = vmul.f32 %v1273, %v1278
    %v1280 = vld [vmem:[#allocation2 + $0xe0] sm:$0xff]
    %v1281 = vld [vmem:[#allocation2 + $0xe8] sm:$0xff]
    %v1282 = vld [vmem:[#allocation2 + $0xf0] sm:$0xff]
    %v1283 = vld [vmem:[#allocation2 + $0xf8] sm:$0xff]
    %v1284 = vpack.c.bf16 %v1279, %v1279
    %1285 = vmatprep.subr.bf16.mxu0 %v459
    %1286 = vmatpush1.bf16.msra.mxu0 %v458
    %1287 = vmatprep.subr.bf16.mxu0 %v463
    %1288 = vmatpush1.bf16.msra.mxu0 %v462
    %1289 = vmatprep.subr.bf16.mxu0 %v467
    %1290 = vmatpush1.bf16.msra.mxu0 %v466
    %1291 = vmatprep.subr.bf16.mxu0 %v471
    %1292 = vmatpush1.bf16.msra.mxu0 %v470
    %1293 = vmatprep.subr.bf16.mxu0 %v475
    %1294 = vmatpush1.bf16.msra.mxu0 %v474
    %1295 = vmatprep.subr.bf16.mxu0 %v479
    %1296 = vmatpush1.bf16.msra.mxu0 %v478
    %1297 = vmatprep.subr.bf16.mxu0 %v483
    %1298 = vmatpush1.bf16.msra.mxu0 %v482
    %1299 = vmatprep.subr.bf16.mxu0 %v487
    %1300 = vmatpush1.bf16.msra.mxu0 %v486
    %1301 = vmatprep.subr.bf16.mxu0 0
    %1302 = vmatpush1.bf16.msra.mxu0 0
    %1303 = vmatprep.subr.bf16.mxu0 0
    %1304 = vmatpush1.bf16.msra.mxu0 0
    %1305 = vmatprep.subr.bf16.mxu0 0
    %1306 = vmatpush1.bf16.msra.mxu0 0
    %1307 = vmatprep.subr.bf16.mxu0 0
    %1308 = vmatpush1.bf16.msra.mxu0 0
    %1309 = vmatprep.subr.bf16.mxu0 0
    %1310 = vmatpush1.bf16.msra.mxu0 0
    %1311 = vmatprep.subr.bf16.mxu0 0
    %1312 = vmatpush1.bf16.msra.mxu0 0
    %1313 = vmatprep.subr.bf16.mxu0 0
    %1314 = vmatpush1.bf16.msra.mxu0 0
    %1315 = vmatprep.subr.bf16.mxu0 0
    %1316 = vmatpush1.bf16.msra.mxu0 0
    %1317 = vmatprep.mubr.bf16.mxu0 0
    %1318 = vmatmul.mubr.bf16.gmra.mrb[0].mxu0 %v1284
    %v1319 = vpop.f32.mrb[0].mxu0
    %v1320 = vadd.f32 0.0, %v1319
    %v1321 = vpop.f32.mrb[0].mxu0
    %v1322 = vadd.f32 0.0, %v1321
    %v1323 = vpop.f32.mrb[0].mxu0
    %v1324 = vpop.f32.mrb[0].mxu0
    %1325 = vdwg.mxu0
    %1326 = vmatprep.subr.bf16.mxu0 %v461
    %1327 = vmatpush1.bf16.msra.mxu0 %v460
    %1328 = vmatprep.subr.bf16.mxu0 %v465
    %1329 = vmatpush1.bf16.msra.mxu0 %v464
    %1330 = vmatprep.subr.bf16.mxu0 %v469
    %1331 = vmatpush1.bf16.msra.mxu0 %v468
    %1332 = vmatprep.subr.bf16.mxu0 %v473
    %1333 = vmatpush1.bf16.msra.mxu0 %v472
    %1334 = vmatprep.subr.bf16.mxu0 %v477
    %1335 = vmatpush1.bf16.msra.mxu0 %v476
    %1336 = vmatprep.subr.bf16.mxu0 %v481
    %1337 = vmatpush1.bf16.msra.mxu0 %v480
    %1338 = vmatprep.subr.bf16.mxu0 %v485
    %1339 = vmatpush1.bf16.msra.mxu0 %v484
    %1340 = vmatprep.subr.bf16.mxu0 %v489
    %1341 = vmatpush1.bf16.msra.mxu0 %v488
    %1342 = vmatprep.subr.bf16.mxu0 0
    %1343 = vmatpush1.bf16.msra.mxu0 0
    %1344 = vmatprep.subr.bf16.mxu0 0
    %1345 = vmatpush1.bf16.msra.mxu0 0
    %1346 = vmatprep.subr.bf16.mxu0 0
    %1347 = vmatpush1.bf16.msra.mxu0 0
    %1348 = vmatprep.subr.bf16.mxu0 0
    %1349 = vmatpush1.bf16.msra.mxu0 0
    %1350 = vmatprep.subr.bf16.mxu0 0
    %1351 = vmatpush1.bf16.msra.mxu0 0
    %1352 = vmatprep.subr.bf16.mxu0 0
    %1353 = vmatpush1.bf16.msra.mxu0 0
    %1354 = vmatprep.subr.bf16.mxu0 0
    %1355 = vmatpush1.bf16.msra.mxu0 0
    %1356 = vmatprep.subr.bf16.mxu0 0
    %1357 = vmatpush1.bf16.msra.mxu0 0
    %1358 = vmatprep.mubr.bf16.mxu0 0
    %1359 = vmatmul.mubr.bf16.gmra.mrb[0].mxu0 %v1284
    %v1360 = vpop.f32.mrb[0].mxu0
    %v1361 = vadd.f32 0.0, %v1360
    %v1362 = vpop.f32.mrb[0].mxu0
    %v1363 = vadd.f32 0.0, %v1362
    %v1364 = vpop.f32.mrb[0].mxu0
    %v1365 = vpop.f32.mrb[0].mxu0
    %1366 = vdwg.mxu0
    %v1367 = vadd.f32 %v1280, %v1320
    %v1368 = vadd.f32 %v1281, %v1322
    %v1369 = vadd.f32 %v1282, %v1361
    %v1370 = vadd.f32 %v1283, %v1363
    %v1371 = vmul.f32 %v1367, 0.5
    %v1372 = vmul.f32 %v1368, 0.5
    %v1373 = vmul.f32 %v1369, 0.5
    %v1374 = vtanh.pop %v1371
    %v1375 = vtanh.pop %v1372
    %v1376 = vtanh.pop %v1373
    %v1377 = vmul.f32 %v1374, 0.5
    %v1378 = vmul.f32 %v1375, 0.5
    %v1379 = vmul.f32 %v1376, 0.5
    %v1380 = vadd.f32 %v1377, 0.5
    %v1381 = vadd.f32 %v1378, 0.5
    %v1382 = vadd.f32 %v1379, 0.5
    %v1383 = vtanh.pop %v1370
    %v1384 = vmul.f32 %v1381, %v1277
    %v1385 = vmul.f32 %v1380, %v1383
    %v1386 = vadd.f32 %v1384, %v1385
    %v1387 = vtanh.pop %v1386
    %v1388 = vmul.f32 %v1382, %v1387
    %v1389 = vpack.c.bf16 %v1388, %v1388
    %v1390 = vld [vmem:[#allocation6] sm:$0xf]
    %v1391 = vld [vmem:[#allocation6 + $0x4] sm:$0xf]
    %v1392 = vld [vmem:[#allocation6 + $0x8] sm:$0xf]
    %v1393 = vld [vmem:[#allocation6 + $0xc] sm:$0xf]
    %v1394 = vld [vmem:[#allocation6 + $0x10] sm:$0xf]
    %v1395 = vld [vmem:[#allocation6 + $0x14] sm:$0xf]
    %v1396 = vld [vmem:[#allocation6 + $0x18] sm:$0xf]
    %v1397 = vld [vmem:[#allocation6 + $0x1c] sm:$0xf]
    %v1398 = vld [vmem:[#allocation6 + $0x20] sm:$0xf]
    %v1399 = vld [vmem:[#allocation6 + $0x24] sm:$0xf]
    %v1400 = vld [vmem:[#allocation6 + $0x28] sm:$0xf]
    %v1401 = vld [vmem:[#allocation6 + $0x2c] sm:$0xf]
    %v1402 = vld [vmem:[#allocation6 + $0x30] sm:$0xf]
    %v1403 = vld [vmem:[#allocation6 + $0x34] sm:$0xf]
    %v1404 = vld [vmem:[#allocation6 + $0x38] sm:$0xf]
    %v1405 = vld [vmem:[#allocation6 + $0x3c] sm:$0xf]
    %v1406 = vld [vmem:[%s5] sm:$0x1]
    %v1408 = vlaneseq
    %v1409 = vshrl.u32 %v1408, 7
    %v1410 = vsub.s32 0, %v1409
    %v1411 = vrot.slane %v1406, %v1410
    %v1429 = vunpack.c.l.b16 %v1390
    %v1430 = vunpack.c.l.b16 %v1391
    %v1431 = vunpack.c.l.b16 %v1392
    %v1432 = vunpack.c.l.b16 %v1393
    %v1433 = vunpack.c.l.b16 %v1394
    %v1434 = vunpack.c.l.b16 %v1395
    %v1435 = vunpack.c.l.b16 %v1396
    %v1436 = vunpack.c.l.b16 %v1397
    %v1437 = vunpack.c.l.b16 %v1398
    %v1438 = vunpack.c.l.b16 %v1399
    %v1439 = vunpack.c.l.b16 %v1400
    %v1440 = vunpack.c.l.b16 %v1401
    %v1441 = vunpack.c.l.b16 %v1402
    %v1442 = vunpack.c.l.b16 %v1403
    %v1443 = vunpack.c.l.b16 %v1404
    %v1444 = vunpack.c.l.b16 %v1405
    %v1445 = vpack.c.b16 %v1430, %v1429
    %v1446 = vpack.c.b16 %v1432, %v1431
    %v1447 = vpack.c.b16 %v1434, %v1433
    %v1448 = vpack.c.b16 %v1436, %v1435
    %v1449 = vpack.c.b16 %v1438, %v1437
    %v1450 = vpack.c.b16 %v1440, %v1439
    %v1451 = vpack.c.b16 %v1442, %v1441
    %v1452 = vpack.c.b16 %v1444, %v1443
    %1461 = vmatprep.subr.bf16.mxu0 0
    %1462 = vmatpush1.bf16.msra.mxu0 %v1445
    %1463 = vmatprep.subr.bf16.mxu0 0
    %1464 = vmatpush1.bf16.msra.mxu0 %v1446
    %1465 = vmatprep.subr.bf16.mxu0 0
    %1466 = vmatpush1.bf16.msra.mxu0 %v1447
    %1467 = vmatprep.subr.bf16.mxu0 0
    %1468 = vmatpush1.bf16.msra.mxu0 %v1448
    %1469 = vmatprep.subr.bf16.mxu0 0
    %1470 = vmatpush1.bf16.msra.mxu0 %v1449
    %1471 = vmatprep.subr.bf16.mxu0 0
    %1472 = vmatpush1.bf16.msra.mxu0 %v1450
    %1473 = vmatprep.subr.bf16.mxu0 0
    %1474 = vmatpush1.bf16.msra.mxu0 %v1451
    %1475 = vmatprep.subr.bf16.mxu0 0
    %1476 = vmatpush1.bf16.msra.mxu0 %v1452
    %1477 = vmatprep.subr.bf16.mxu0 0
    %1478 = vmatpush1.bf16.msra.mxu0 0
    %1479 = vmatprep.subr.bf16.mxu0 0
    %1480 = vmatpush1.bf16.msra.mxu0 0
    %1481 = vmatprep.subr.bf16.mxu0 0
    %1482 = vmatpush1.bf16.msra.mxu0 0
    %1483 = vmatprep.subr.bf16.mxu0 0
    %1484 = vmatpush1.bf16.msra.mxu0 0
    %1485 = vmatprep.subr.bf16.mxu0 0
    %1486 = vmatpush1.bf16.msra.mxu0 0
    %1487 = vmatprep.subr.bf16.mxu0 0
    %1488 = vmatpush1.bf16.msra.mxu0 0
    %1489 = vmatprep.subr.bf16.mxu0 0
    %1490 = vmatpush1.bf16.msra.mxu0 0
    %1491 = vmatprep.subr.bf16.mxu0 0
    %1492 = vmatpush1.bf16.msra.mxu0 0
    %1493 = vmatprep.mubr.bf16.mxu0 0
    %1494 = vmatmul.mubr.bf16.gmra.mrb[0].mxu0 %v1389
    %v1495 = vpop.f32.mrb[0].mxu0
    %v1496 = vadd.f32 %v1411, %v1495
    %v1497 = vpop.f32.mrb[0].mxu0
    %v1498 = vpop.f32.mrb[0].mxu0
    %v1499 = vpop.f32.mrb[0].mxu0
    %1500 = vdwg.mxu0
    %1501 = vst [vmem:[#allocation8] sm:$0xff] %v1496
    // Predicated region
    $region34: #{tpu_custom_call.1} parent=1 // pred_check
      _
    $region35: #{tpu_custom_call.1} parent=1 // pred_check_branch
      %1503 = sbr.rel (0) target = $region37
    $region36: #{tpu_custom_call.1} parent=1 // pred_region
      %s1505 = ssub.s32 128, 128
      %1506 = vsyncadd [#allocation5], %s1505
      %s1508 = sshll.u32 [#allocation8], 4
      %s1509 = int_to_ptr.vmem [resolvable:$true] %s1508
      %1511 = dma.vmem_to_hbm [thread:$0]  %s1509, 128, %s6, [#allocation5]
    $region37: #{tpu_custom_call.1} parent=1 // pred_fallthru
      _
    // Predicated region
    $region38: #{tpu_custom_call.1} parent=1 // pred_check
      _
    $region39: #{tpu_custom_call.1} parent=1 // pred_check_branch
      %1513 = sbr.rel (0) target = $region41
    $region40: #{tpu_custom_call.1} parent=1 // pred_region
      %1514 = dma.done [#allocation5], 128
    $region41: #{tpu_custom_call.1} parent=1 // pred_fallthru
      _
    %1515 = vsyncpa [#allocation4], 1
    %1516 = vsyncpa [#allocation7], 1
    %1517 = vsyncpa [#allocation5], 1

</llo_original>
